<compile_context>
chip_gen: v5e
topology: v5e:2x2
jax: 0.10.0
libtpu: 0.0.40
codegen_flags: <defaults>
</compile_context>

<pallas_src>
import functools

import jax
import jax.numpy as jnp
from jax.experimental import pallas as pl
from jax.experimental.pallas import tpu as pltpu


# ----------------------------------------------------------------------------
# Pallas kernel: one RGCN layer with in-kernel basis decomposition.
# Grid = (node row tiles [parallel], compacted relation slots [sequential]).
# ----------------------------------------------------------------------------
def _rgcn_layer_kernel(rel_ids_ref,   # SMEM (n_tiles*R,) int32 — compacted relation ids (scalar prefetch)
                       nnz_ref,       # SMEM (n_tiles,)   int32 — #nonzero relations per row tile
                       adj_ref,       # VMEM (1, TM, Np)  bf16  — adjacency tile of relation rel_ids[i*R+k]
                       h_ref,         # VMEM (Np, Din)    bf16  — full node features (resident)
                       coef_ref,      # VMEM (1, 1, NBp)  f32   — coef row of the current relation (gathered)
                       basis_ref,     # VMEM (NB, Din, Dout) bf16 (resident)
                       w_self_ref,    # VMEM (Din, Dout)  bf16  (resident)
                       bias_ref,      # VMEM (1, Dout)    f32   (resident)
                       out_ref,       # VMEM (TM, Dout)   f32   (written once, at the last slot)
                       msg_ref,       # VMEM scratch (NB, TM, Din) f32 — per-basis message accumulator
                       *, num_bases, tm):
    i = pl.program_id(0)                    # node (dst-row) tile          — parallel
    k = pl.program_id(1)                    # compacted relation slot      — reduction (last axis)

    @pl.when(k == 0)
    def _init():
        msg_ref[...] = jnp.zeros_like(msg_ref)

    # Message pass for the k-th *nonzero* relation of this row tile.  Slots with
    # k >= nnz[i] carry a repeated relation id, so their adjacency / coef DMAs are
    # skipped by the pipeline (unchanged block index) and their compute is skipped here.
    @pl.when(k < nnz_ref[i])
    def _accumulate():
        m = jnp.dot(adj_ref[0], h_ref[...],
                    preferred_element_type=jnp.float32)        # (TM, Din) f32 on the MXU
        crow = coef_ref[0]                                      # (1, NBp) f32
        for b in range(num_bases):                              # nb is small: static unroll
            msg_ref[b] = msg_ref[b] + m * crow[:, b:b + 1]      # (1,1) broadcast scale

    # Finalize: self-loop + nb basis matmuls + bias, ReLU — a single out_ref write.
    @pl.when(k == pl.num_programs(1) - 1)
    def _finalize():
        row0 = pl.multiple_of(i * tm, tm)
        h_tile = h_ref[pl.ds(row0, tm), :]
        acc = jnp.dot(h_tile, w_self_ref[...],
                      preferred_element_type=jnp.float32) + bias_ref[...]
        for b in range(num_bases):
            acc = acc + jnp.dot(msg_ref[b].astype(jnp.bfloat16), basis_ref[b],
                                preferred_element_type=jnp.float32)
        out_ref[...] = jnp.maximum(acc, 0.0)


# ----------------------------------------------------------------------------
# Planning helpers.
# ----------------------------------------------------------------------------
def _round_up(x, m):
    return ((x + m - 1) // m) * m


def _vmem_bytes():
    """(physical, budget) VMEM bytes. ~3/4 of physical, capped at 96 MiB.
    NOTE: on v7x pltpu.get_tpu_info() is assumed to report per-TensorCore VMEM
    (64 MiB); the cap + 3/4 headroom keeps both cores' pipelines safe."""
    try:
        phys = int(pltpu.get_tpu_info().vmem_capacity_bytes)
    except Exception:
        phys = 64 * 1024 * 1024                 # conservative (v7x-sized) fallback
    return phys, min((phys * 3) // 4, 96 * 1024 * 1024)


def _plan(num_nodes, d_in, d_out, num_bases, *, tm=None):
    """Pick (tm, n_pad, adj_bufs, vmem_budget) that provably fits the budget."""
    phys, budget = _vmem_bytes()
    small_vmem = phys <= 64 * 1024 * 1024       # v7x-class (64 MiB / TensorCore)
    d_in_p = _round_up(d_in, 128)
    d_out_p = _round_up(d_out, 128)
    base_np = _round_up(max(num_nodes, 1), 128)

    def footprint(tm_c, n_pad_c, bufs):
        # Conservative: every pallas input double-buffered, even resident ones.
        fixed = 2 * (n_pad_c * d_in_p * 2                      # resident h (bf16)
                     + num_bases * d_in_p * d_out_p * 2        # resident basis (bf16)
                     + d_in_p * d_out_p * 2                    # W_self (bf16)
                     + d_out_p * 4                             # bias (f32)
                     + 128 * 4)                                # coef row (f32)
        stream = (bufs * tm_c * n_pad_c * 2                    # adj tiles (bf16), pipelined
                  + 2 * tm_c * d_out_p * 4                     # out tile (f32)
                  + num_bases * tm_c * d_in_p * 4)             # msg scratch (f32)
        return fixed + stream

    if tm is not None:                                         # explicit override (tests)
        n_pad = _round_up(num_nodes, tm)
        if footprint(tm, n_pad, 2) > budget:
            raise ValueError("requested tm does not fit the VMEM budget")
        return tm, n_pad, 2, budget

    # v7x: modest tiles, depth-2 adj pipeline.  v5e/v6e: big tiles, try depth 3.
    tm_candidates = (256, 128, 512) if small_vmem else (512, 256, 128)
    buf_candidates = (2,) if small_vmem else (3, 2)
    for tm_c in tm_candidates:
        tm_eff = min(tm_c, base_np)
        n_pad = _round_up(num_nodes, tm_eff)                   # pad N up to the chosen TM
        for bufs in buf_candidates:
            if footprint(tm_eff, n_pad, bufs) <= budget:
                return tm_eff, n_pad, bufs, budget

    # Minimal config; hard feasibility check (prevents compile-time VMEM OOM on v7x).
    tm_eff = min(128, base_np)
    n_pad = _round_up(num_nodes, tm_eff)
    if footprint(tm_eff, n_pad, 2) > budget:
        # TODO(synk): tile h along the src-node axis (3rd grid axis + f32 VMEM
        # accumulator) for graphs whose resident h alone exceeds the VMEM budget.
        raise ValueError("graph too large for the resident-h RGCN kernel; "
                         "src-axis tiling not implemented")
    return tm_eff, n_pad, 2, budget


def build_graph_blocks(src, dst, rel, norm, num_nodes, num_rels, tm, n_pad):
    """Padded bf16 dense adjacency + per-row-tile relation compaction tables.

    Counts come from the edge list (no dense O(R*N^2) scan); the adjacency is
    densified directly into its padded bf16 form (single HBM materialization).
    """
    n_tiles = n_pad // tm
    tile = dst // tm
    flat = (tile * num_rels + rel).astype(jnp.int32)
    counts = (jnp.zeros((n_tiles * num_rels,), jnp.int32)
              .at[flat].add(1)
              .reshape(n_tiles, num_rels))                               # (n_tiles, R)
    nnz = (counts > 0).sum(axis=1).astype(jnp.int32)                     # (n_tiles,)
    # Nonzero relations first; tail slots repeat the last nonzero id so the
    # pipeline sees an unchanged block index and skips the (all-zero) adj DMA.
    order = jnp.argsort((counts == 0).astype(jnp.int32), axis=1)
    k_idx = jnp.minimum(jnp.arange(num_rels, dtype=jnp.int32)[None, :],
                        jnp.maximum(nnz - 1, 0)[:, None])
    rel_ids = jnp.take_along_axis(order, k_idx, axis=1).astype(jnp.int32)

    # TODO(synk): for very large graphs the dense (R, Np, Np) adjacency is still the
    # scalability cliff; a block-sparse / edge-list gather formulation is the real fix.
    # Note: duplicate (rel, dst, src) edges accumulate their norms in bf16 here.
    adj = (jnp.zeros((num_rels, n_pad, n_pad), jnp.bfloat16)
           .at[rel, dst, src].add(norm.astype(jnp.bfloat16)))            # out[dst] += norm*h[src]@W_r
    return adj, rel_ids.reshape(-1), nnz


# ----------------------------------------------------------------------------
# One RGCN layer via pallas_call.
# ----------------------------------------------------------------------------
def rgcn_layer(adj_b, rel_ids_flat, nnz, h, coef, basis, w_self, bias,
               *, n_valid, tm, k_steps, adj_bufs, vmem_limit):
    R, n_pad, _ = adj_b.shape
    nb, D_in, D_out = basis.shape
    d_in_p = _round_up(D_in, 128)
    d_out_p = _round_up(D_out, 128)
    nb_p = _round_up(nb, 128)
    n_tiles = n_pad // tm

    # bf16 MXU inputs, f32 accumulation; lane dims padded to multiples of 128.
    h_b = jnp.pad(h, ((0, n_pad - h.shape[0]), (0, d_in_p - D_in))).astype(jnp.bfloat16)
    basis_b = jnp.pad(basis, ((0, 0), (0, d_in_p - D_in), (0, d_out_p - D_out))).astype(jnp.bfloat16)
    w_self_b = jnp.pad(w_self, ((0, d_in_p - D_in), (0, d_out_p - D_out))).astype(jnp.bfloat16)
    bias_p = jnp.pad(bias, ((0, 0), (0, d_out_p - D_out))).astype(jnp.float32)
    coef_p = jnp.pad(coef.astype(jnp.float32), ((0, 0), (0, nb_p - nb))).reshape(R, 1, nb_p)

    def adj_idx(i, k, rids, nz):
        return (rids[i * R + k], i, 0)

    def coef_idx(i, k, rids, nz):
        return (rids[i * R + k], 0, 0)

    if adj_bufs > 2:
        try:    # deeper adj pipeline on VMEM-rich chips (v5e/v6e)
            adj_spec = pl.BlockSpec((1, tm, n_pad), adj_idx,
                                    pipeline_mode=pl.Buffered(buffer_count=adj_bufs))
        except TypeError:
            adj_spec = pl.BlockSpec((1, tm, n_pad), adj_idx)
    else:
        adj_spec = pl.BlockSpec((1, tm, n_pad), adj_idx)

    kernel = functools.partial(_rgcn_layer_kernel, num_bases=nb, tm=tm)

    out = pl.pallas_call(
        kernel,
        out_shape=jax.ShapeDtypeStruct((n_pad, d_out_p), jnp.float32),
        grid_spec=pltpu.PrefetchScalarGridSpec(
            num_scalar_prefetch=2,
            grid=(n_tiles, k_steps),          # node tiles (parallel) x compacted relation slots (last)
            in_specs=[
                adj_spec,                                                         # adj (1, TM, Np)
                pl.BlockSpec((n_pad, d_in_p), lambda i, k, rids, nz: (0, 0)),     # h (resident)
                pl.BlockSpec((1, 1, nb_p), coef_idx),                             # coef row (gathered)
                pl.BlockSpec((nb, d_in_p, d_out_p),
                             lambda i, k, rids, nz: (0, 0, 0)),                   # basis (resident)
                pl.BlockSpec((d_in_p, d_out_p), lambda i, k, rids, nz: (0, 0)),   # W_self (resident)
                pl.BlockSpec((1, d_out_p), lambda i, k, rids, nz: (0, 0)),        # bias (resident)
            ],
            out_specs=pl.BlockSpec((tm, d_out_p), lambda i, k, rids, nz: (i, 0)),
            scratch_shapes=[pltpu.VMEM((nb, tm, d_in_p), jnp.float32)],
        ),
        compiler_params=pltpu.CompilerParams(
            dimension_semantics=("parallel", "arbitrary"),
            vmem_limit_bytes=vmem_limit,
        ),
    )(rel_ids_flat, nnz, adj_b, h_b, coef_p, basis_b, w_self_b, bias_p)

    return out[:n_valid, :D_out]


# ----------------------------------------------------------------------------
# BaseRGCN equivalent (JAX glue: parameters, layer stacking, graph prep).
# All heavy compute is inside the Pallas kernel above.
# ----------------------------------------------------------------------------
class BaseRGCNPallas:
    def __init__(self, num_nodes, h_dim, out_dim, num_rels, num_bases,
                 num_hidden_layers=1, dropout=0, use_self_loop=False, key=None):
        self.num_nodes = num_nodes
        self.h_dim = h_dim
        self.out_dim = out_dim
        self.num_rels = num_rels
        self.num_bases = None if num_bases < 0 else num_bases
        self.num_hidden_layers = num_hidden_layers
        self.dropout = dropout            # dropout=0 -> identity (eval-mode semantics)
        self.use_self_loop = use_self_loop  # concrete kgvae layers use self-loop; always applied here
        self.params = self._build_model(key if key is not None else jax.random.PRNGKey(0))

    def _build_model(self, key):
        # build_input_layer / build_output_layer return None in BaseRGCN, so the
        # stack is num_hidden_layers hidden layers (h_dim -> h_dim), basis-decomposed.
        params = []
        nb = self.num_bases if self.num_bases is not None else self.num_rels
        for _ in range(self.num_hidden_layers):
            key, k1, k2, k3 = jax.random.split(key, 4)
            scale = 1.0 / jnp.sqrt(self.h_dim)
            basis = jax.random.normal(k1, (nb, self.h_dim, self.h_dim), jnp.float32) * scale
            coef = jax.random.normal(k2, (self.num_rels, nb), jnp.float32)
            w_self = jax.random.normal(k3, (self.h_dim, self.h_dim), jnp.float32) * scale
            bias = jnp.zeros((1, self.h_dim), jnp.float32)
            params.append((basis, coef, w_self, bias))
        return params

    def forward(self, src, dst, rel, norm, h, *, tm=None):
        nb = self.num_bases if self.num_bases is not None else self.num_rels
        tm, n_pad, adj_bufs, budget = _plan(self.num_nodes, self.h_dim, self.h_dim, nb, tm=tm)
        adj_b, rel_ids_flat, nnz = build_graph_blocks(
            src, dst, rel, norm, self.num_nodes, self.num_rels, tm, n_pad)
        try:
            k_steps = max(int(jnp.max(nnz)), 1)    # concrete under eager execution
        except Exception:
            k_steps = self.num_rels                # traced (jit): all slots, DMAs still skipped
        for (basis, coef, w_self, bias) in self.params:
            # Basis decomposition lives inside the kernel: no W_rel materialization.
            h = rgcn_layer(adj_b, rel_ids_flat, nnz, h, coef, basis, w_self, bias,
                           n_valid=self.num_nodes, tm=tm, k_steps=k_steps,
                           adj_bufs=adj_bufs, vmem_limit=budget)
            # TODO(synk): dropout > 0 (training mode) not implemented; default dropout=0.
        return h

    def get_kl(self, z):
        return jnp.zeros((1,), jnp.float32)


# ----------------------------------------------------------------------------
# Pure-JAX reference (mirrors the kernel's bf16-input / f32-accumulate numerics).
# ----------------------------------------------------------------------------
def rgcn_layer_ref(adj_b, h, coef, basis, w_self, bias):
    bf = lambda x: x.astype(jnp.bfloat16).astype(jnp.float32)
    m = jnp.einsum('rnm,md->rnd', adj_b.astype(jnp.float32), bf(h))
    mb = jnp.einsum('rb,rnd->bnd', coef.astype(jnp.float32), m)    # per-basis messages
    agg = jnp.einsum('bnd,bde->ne', bf(mb), bf(basis))
    return jnp.maximum(agg + bf(h) @ bf(w_self) + bias, 0.0)


def _dense_bf16_adj(num_rels, num_nodes, src, dst, rel, norm):
    n_pad = _round_up(num_nodes, 128)
    adj = (jnp.zeros((num_rels, n_pad, n_pad), jnp.bfloat16)
           .at[rel, dst, src].add(norm.astype(jnp.bfloat16)))
    return adj[:, :num_nodes, :num_nodes]


if __name__ == "__main__":
    # ---- Test 1: small model-consistent shapes, 2 layers, some empty relations ----
    num_nodes, h_dim, num_rels, num_bases = 32, 32, 12, 2
    num_hidden_layers, num_edges = 2, 128

    key = jax.random.PRNGKey(0)
    k_src, k_dst, k_rel, k_h, k_model, k2 = jax.random.split(key, 6)
    src = jax.random.randint(k_src, (num_edges,), 0, num_nodes)
    dst = jax.random.randint(k_dst, (num_edges,), 0, num_nodes)
    # Leave the last few relations empty so the compaction / DMA-skip path is exercised.
    rel = jax.random.randint(k_rel, (num_edges,), 0, num_rels - 4)
    norm = jnp.ones((num_edges,), jnp.float32) / 4.0
    h0 = jax.random.normal(k_h, (num_nodes, h_dim), jnp.float32)

    model = BaseRGCNPallas(num_nodes, h_dim, h_dim, num_rels, num_bases,
                           num_hidden_layers=num_hidden_layers, key=k_model)
    out = jax.block_until_ready(model.forward(src, dst, rel, norm, h0))

    adj_ref_b = _dense_bf16_adj(num_rels, num_nodes, src, dst, rel, norm)
    h_ref = h0
    for (basis, coef, w_self, bias) in model.params:
        h_ref = rgcn_layer_ref(adj_ref_b, h_ref, coef, basis, w_self, bias)
    assert out.shape == (num_nodes, h_dim)
    assert jnp.allclose(out, h_ref, atol=2e-2, rtol=2e-2)

    # ---- Test 2: multi-tile path (n_tiles = 2) via forced tm override ----
    num_nodes2, num_edges2 = 200, 300
    ks2, kd2, kr2, kh2, km2 = jax.random.split(k2, 5)
    src2 = jax.random.randint(ks2, (num_edges2,), 0, num_nodes2)
    dst2 = jax.random.randint(kd2, (num_edges2,), 0, num_nodes2)
    rel2 = jax.random.randint(kr2, (num_edges2,), 0, num_rels)
    norm2 = jnp.ones((num_edges2,), jnp.float32) / 4.0
    h2 = jax.random.normal(kh2, (num_nodes2, h_dim), jnp.float32)

    model2 = BaseRGCNPallas(num_nodes2, h_dim, h_dim, num_rels, num_bases,
                            num_hidden_layers=1, key=km2)
    out2 = jax.block_until_ready(model2.forward(src2, dst2, rel2, norm2, h2, tm=128))

    adj2_b = _dense_bf16_adj(num_rels, num_nodes2, src2, dst2, rel2, norm2)
    basis2, coef2, w_self2, bias2 = model2.params[0]
    ref2 = rgcn_layer_ref(adj2_b, h2, coef2, basis2, w_self2, bias2)
    assert out2.shape == (num_nodes2, h_dim)
    assert jnp.allclose(out2, ref2, atol=2e-2, rtol=2e-2)

    kl = jax.block_until_ready(model.get_kl(out))
    assert kl.shape == (1,)

    print("KERNEL_OK")
</pallas_src>

<mosaic_0001>
module attributes {stable_mosaic.version = 11 : i64} {
  func.func @_rgcn_layer_kernel(%arg0: i32, %arg1: i32, %arg2: memref<12xi32, #tpu.memory_space<smem>>, %arg3: memref<1xi32, #tpu.memory_space<smem>>, %arg4: memref<1x128x128xbf16, #tpu.memory_space<vmem>>, %arg5: memref<128x128xbf16, #tpu.memory_space<vmem>>, %arg6: memref<1x1x128xf32, #tpu.memory_space<vmem>>, %arg7: memref<2x128x128xbf16, #tpu.memory_space<vmem>>, %arg8: memref<128x128xbf16, #tpu.memory_space<vmem>>, %arg9: memref<1x128xf32, #tpu.memory_space<vmem>>, %arg10: memref<128x128xf32, #tpu.memory_space<vmem>>, %arg11: memref<2x128x128xf32, #tpu.memory_space<vmem>>) attributes {dimension_semantics = [#tpu.dimension_semantics<parallel>, #tpu.dimension_semantics<arbitrary>], iteration_bounds = array<i64: 1, 8>, scalar_prefetch = 2 : i64, scratch_operands = 1 : i64, tpu.core_type = #tpu.core_type<tc>, window_params = [{transform_indices = @transform_0, window_bounds = array<i64: 1, 128, 128>}, {pipeline_mode = #tpu.pipeline_mode<synchronous>, transform_indices = @transform_1, window_bounds = array<i64: 128, 128>}, {transform_indices = @transform_2, window_bounds = array<i64: 1, 1, 128>}, {pipeline_mode = #tpu.pipeline_mode<synchronous>, transform_indices = @transform_3, window_bounds = array<i64: 2, 128, 128>}, {pipeline_mode = #tpu.pipeline_mode<synchronous>, transform_indices = @transform_4, window_bounds = array<i64: 128, 128>}, {pipeline_mode = #tpu.pipeline_mode<synchronous>, transform_indices = @transform_5, window_bounds = array<i64: 1, 128>}, {transform_indices = @transform_6, window_bounds = array<i64: 128, 128>}]} {
    %c0_i32 = arith.constant 0 : i32
    %0 = arith.cmpi eq, %arg1, %c0_i32 : i32
    %1 = arith.extui %0 : i1 to i32
    %c0_i32_0 = arith.constant 0 : i32
    %2 = arith.cmpi ne, %1, %c0_i32_0 : i32
    scf.if %2 {
      %cst = arith.constant 0.000000e+00 : f32
      %11 = vector.broadcast %cst : f32 to vector<2x128x128xf32>
      %c0 = arith.constant 0 : index
      %c0_3 = arith.constant 0 : index
      %c0_4 = arith.constant 0 : index
      %12 = vector.load %arg11[%c0, %c0_3, %c0_4] : memref<2x128x128xf32, #tpu.memory_space<vmem>>, vector<2x128x128xf32>
      tpu.vector_store %arg11[%c0, %c0_3, %c0_4], %11 {strides = array<i32>} : memref<2x128x128xf32, #tpu.memory_space<vmem>>, vector<2x128x128xf32>,
    } else {
    }
    %3 = arith.index_cast %arg0 : i32 to index
    %4 = memref.load %arg3[%3] : memref<1xi32, #tpu.memory_space<smem>>
    %5 = arith.cmpi slt, %arg1, %4 : i32
    %6 = arith.extui %5 : i1 to i32
    %c0_i32_1 = arith.constant 0 : i32
    %7 = arith.cmpi ne, %6, %c0_i32_1 : i32
    scf.if %7 {
      %c0 = arith.constant 0 : index
      %c0_3 = arith.constant 0 : index
      %c0_4 = arith.constant 0 : index
      %11 = vector.load %arg4[%c0, %c0_3, %c0_4] : memref<1x128x128xbf16, #tpu.memory_space<vmem>>, vector<1x128x128xbf16>
      %12 = vector.shape_cast %11 : vector<1x128x128xbf16> to vector<128x128xbf16>
      %c0_5 = arith.constant 0 : index
      %c0_6 = arith.constant 0 : index
      %13 = vector.load %arg5[%c0_5, %c0_6] : memref<128x128xbf16, #tpu.memory_space<vmem>>, vector<128x128xbf16>
      %cst = arith.constant dense<0.000000e+00> : vector<128x128xf32>
      %14 = tpu.matmul %12, %13, %cst {dimension_numbers = #tpu.dot_dimension_numbers<[1], [0], [0], [1], [0, 0, 1, 1], [], []>} : vector<128x128xbf16>, vector<128x128xbf16>, vector<128x128xf32> -> vector<128x128xf32>
      %c0_7 = arith.constant 0 : index
      %c0_8 = arith.constant 0 : index
      %c0_9 = arith.constant 0 : index
      %15 = vector.load %arg6[%c0_7, %c0_8, %c0_9] : memref<1x1x128xf32, #tpu.memory_space<vmem>>, vector<1x1x128xf32>
      %16 = vector.shape_cast %15 : vector<1x1x128xf32> to vector<1x128xf32>
      %c0_10 = arith.constant 0 : index
      %c0_11 = arith.constant 0 : index
      %c0_12 = arith.constant 0 : index
      %17 = vector.load %arg11[%c0_10, %c0_11, %c0_12] : memref<2x128x128xf32, #tpu.memory_space<vmem>>, vector<1x128x128xf32>
      %18 = vector.shape_cast %17 : vector<1x128x128xf32> to vector<128x128xf32>
      %19 = vector.extract_strided_slice %16 {offsets = [0, 0], sizes = [1, 1], strides = [1, 1]} : vector<1x128xf32> to vector<1x1xf32>
      %20 = vector.broadcast %19 : vector<1x1xf32> to vector<128x128xf32>
      %21 = arith.mulf %14, %20 : vector<128x128xf32>
      %22 = arith.addf %18, %21 : vector<128x128xf32>
      %c0_13 = arith.constant 0 : index
      %c0_14 = arith.constant 0 : index
      %c0_15 = arith.constant 0 : index
      %23 = vector.load %arg11[%c0_13, %c0_14, %c0_15] : memref<2x128x128xf32, #tpu.memory_space<vmem>>, vector<1x128x128xf32>
      %24 = vector.shape_cast %23 : vector<1x128x128xf32> to vector<128x128xf32>
      %25 = vector.shape_cast %22 : vector<128x128xf32> to vector<1x128x128xf32>
      tpu.vector_store %arg11[%c0_13, %c0_14, %c0_15], %25 {strides = array<i32>} : memref<2x128x128xf32, #tpu.memory_space<vmem>>, vector<1x128x128xf32>,
      %c1 = arith.constant 1 : index
      %c0_16 = arith.constant 0 : index
      %c0_17 = arith.constant 0 : index
      %26 = vector.load %arg11[%c1, %c0_16, %c0_17] : memref<2x128x128xf32, #tpu.memory_space<vmem>>, vector<1x128x128xf32>
      %27 = vector.shape_cast %26 : vector<1x128x128xf32> to vector<128x128xf32>
      %28 = vector.extract_strided_slice %16 {offsets = [0, 1], sizes = [1, 1], strides = [1, 1]} : vector<1x128xf32> to vector<1x1xf32>
      %29 = vector.broadcast %28 : vector<1x1xf32> to vector<128x128xf32>
      %30 = arith.mulf %14, %29 : vector<128x128xf32>
      %31 = arith.addf %27, %30 : vector<128x128xf32>
      %c1_18 = arith.constant 1 : index
      %c0_19 = arith.constant 0 : index
      %c0_20 = arith.constant 0 : index
      %32 = vector.load %arg11[%c1_18, %c0_19, %c0_20] : memref<2x128x128xf32, #tpu.memory_space<vmem>>, vector<1x128x128xf32>
      %33 = vector.shape_cast %32 : vector<1x128x128xf32> to vector<128x128xf32>
      %34 = vector.shape_cast %31 : vector<128x128xf32> to vector<1x128x128xf32>
      tpu.vector_store %arg11[%c1_18, %c0_19, %c0_20], %34 {strides = array<i32>} : memref<2x128x128xf32, #tpu.memory_space<vmem>>, vector<1x128x128xf32>,
    } else {
    }
    %c7_i32 = arith.constant 7 : i32
    %8 = arith.cmpi eq, %arg1, %c7_i32 : i32
    %9 = arith.extui %8 : i1 to i32
    %c0_i32_2 = arith.constant 0 : i32
    %10 = arith.cmpi ne, %9, %c0_i32_2 : i32
    scf.if %10 {
      %c128_i32 = arith.constant 128 : i32
      %11 = arith.muli %arg0, %c128_i32 : i32
      %12 = tpu.assume_multiple %11, 128 : i32
      %13 = arith.index_cast %12 : i32 to index
      %c0 = arith.constant 0 : index
      %14 = vector.load %arg5[%13, %c0] : memref<128x128xbf16, #tpu.memory_space<vmem>>, vector<128x128xbf16>
      %c0_3 = arith.constant 0 : index
      %c0_4 = arith.constant 0 : index
      %15 = vector.load %arg8[%c0_3, %c0_4] : memref<128x128xbf16, #tpu.memory_space<vmem>>, vector<128x128xbf16>
      %cst = arith.constant dense<0.000000e+00> : vector<128x128xf32>
      %16 = tpu.matmul %14, %15, %cst {dimension_numbers = #tpu.dot_dimension_numbers<[1], [0], [0], [1], [0, 0, 1, 1], [], []>} : vector<128x128xbf16>, vector<128x128xbf16>, vector<128x128xf32> -> vector<128x128xf32>
      %c0_5 = arith.constant 0 : index
      %c0_6 = arith.constant 0 : index
      %17 = vector.load %arg9[%c0_5, %c0_6] : memref<1x128xf32, #tpu.memory_space<vmem>>, vector<1x128xf32>
      %18 = vector.broadcast %17 : vector<1x128xf32> to vector<128x128xf32>
      %19 = arith.addf %16, %18 : vector<128x128xf32>
      %c0_7 = arith.constant 0 : index
      %c0_8 = arith.constant 0 : index
      %c0_9 = arith.constant 0 : index
      %20 = vector.load %arg11[%c0_7, %c0_8, %c0_9] : memref<2x128x128xf32, #tpu.memory_space<vmem>>, vector<1x128x128xf32>
      %21 = vector.shape_cast %20 : vector<1x128x128xf32> to vector<128x128xf32>
      %22 = arith.truncf %21 : vector<128x128xf32> to vector<128x128xbf16>
      %c0_10 = arith.constant 0 : index
      %c0_11 = arith.constant 0 : index
      %c0_12 = arith.constant 0 : index
      %23 = vector.load %arg7[%c0_10, %c0_11, %c0_12] : memref<2x128x128xbf16, #tpu.memory_space<vmem>>, vector<1x128x128xbf16>
      %24 = vector.shape_cast %23 : vector<1x128x128xbf16> to vector<128x128xbf16>
      %cst_13 = arith.constant dense<0.000000e+00> : vector<128x128xf32>
      %25 = tpu.matmul %22, %24, %cst_13 {dimension_numbers = #tpu.dot_dimension_numbers<[1], [0], [0], [1], [0, 0, 1, 1], [], []>} : vector<128x128xbf16>, vector<128x128xbf16>, vector<128x128xf32> -> vector<128x128xf32>
      %26 = arith.addf %19, %25 : vector<128x128xf32>
      %c1 = arith.constant 1 : index
      %c0_14 = arith.constant 0 : index
      %c0_15 = arith.constant 0 : index
      %27 = vector.load %arg11[%c1, %c0_14, %c0_15] : memref<2x128x128xf32, #tpu.memory_space<vmem>>, vector<1x128x128xf32>
      %28 = vector.shape_cast %27 : vector<1x128x128xf32> to vector<128x128xf32>
      %29 = arith.truncf %28 : vector<128x128xf32> to vector<128x128xbf16>
      %c1_16 = arith.constant 1 : index
      %c0_17 = arith.constant 0 : index
      %c0_18 = arith.constant 0 : index
      %30 = vector.load %arg7[%c1_16, %c0_17, %c0_18] : memref<2x128x128xbf16, #tpu.memory_space<vmem>>, vector<1x128x128xbf16>
      %31 = vector.shape_cast %30 : vector<1x128x128xbf16> to vector<128x128xbf16>
      %cst_19 = arith.constant dense<0.000000e+00> : vector<128x128xf32>
      %32 = tpu.matmul %29, %31, %cst_19 {dimension_numbers = #tpu.dot_dimension_numbers<[1], [0], [0], [1], [0, 0, 1, 1], [], []>} : vector<128x128xbf16>, vector<128x128xbf16>, vector<128x128xf32> -> vector<128x128xf32>
      %33 = arith.addf %26, %32 : vector<128x128xf32>
      %cst_20 = arith.constant 0.000000e+00 : f32
      %34 = vector.broadcast %cst_20 : f32 to vector<128x128xf32>
      %35 = arith.maximumf %33, %34 : vector<128x128xf32>
      %c0_21 = arith.constant 0 : index
      %c0_22 = arith.constant 0 : index
      %36 = vector.load %arg10[%c0_21, %c0_22] : memref<128x128xf32, #tpu.memory_space<vmem>>, vector<128x128xf32>
      tpu.vector_store %arg10[%c0_21, %c0_22], %35 {strides = array<i32>} : memref<128x128xf32, #tpu.memory_space<vmem>>, vector<128x128xf32>,
    } else {
    }
    return
  }
  func.func @transform_0(%arg0: i32, %arg1: i32, %arg2: memref<12xi32, #tpu.memory_space<smem>>, %arg3: memref<1xi32, #tpu.memory_space<smem>>) -> (i32, i32, i32) {
    %c12_i32 = arith.constant 12 : i32
    %0 = arith.muli %arg0, %c12_i32 : i32
    %1 = arith.addi %0, %arg1 : i32
    %2 = arith.index_cast %1 : i32 to index
    %3 = memref.load %arg2[%2] : memref<12xi32, #tpu.memory_space<smem>>
    %c0_i32 = arith.constant 0 : i32
    %c0_i32_0 = arith.constant 0 : i32
    return %3, %arg0, %c0_i32 : i32, i32, i32
  }
  func.func @transform_1(%arg0: i32, %arg1: i32, %arg2: memref<12xi32, #tpu.memory_space<smem>>, %arg3: memref<1xi32, #tpu.memory_space<smem>>) -> (i32, i32) {
    %c0_i32 = arith.constant 0 : i32
    %c0_i32_0 = arith.constant 0 : i32
    %c0_i32_1 = arith.constant 0 : i32
    return %c0_i32, %c0_i32_0 : i32, i32
  }
  func.func @transform_2(%arg0: i32, %arg1: i32, %arg2: memref<12xi32, #tpu.memory_space<smem>>, %arg3: memref<1xi32, #tpu.memory_space<smem>>) -> (i32, i32, i32) {
    %c12_i32 = arith.constant 12 : i32
    %0 = arith.muli %arg0, %c12_i32 : i32
    %1 = arith.addi %0, %arg1 : i32
    %2 = arith.index_cast %1 : i32 to index
    %3 = memref.load %arg2[%2] : memref<12xi32, #tpu.memory_space<smem>>
    %c0_i32 = arith.constant 0 : i32
    %c0_i32_0 = arith.constant 0 : i32
    %c0_i32_1 = arith.constant 0 : i32
    return %3, %c0_i32, %c0_i32_0 : i32, i32, i32
  }
  func.func @transform_3(%arg0: i32, %arg1: i32, %arg2: memref<12xi32, #tpu.memory_space<smem>>, %arg3: memref<1xi32, #tpu.memory_space<smem>>) -> (i32, i32, i32) {
    %c0_i32 = arith.constant 0 : i32
    %c0_i32_0 = arith.constant 0 : i32
    %c0_i32_1 = arith.constant 0 : i32
    %c0_i32_2 = arith.constant 0 : i32
    return %c0_i32, %c0_i32_0, %c0_i32_1 : i32, i32, i32
  }
  func.func @transform_4(%arg0: i32, %arg1: i32, %arg2: memref<12xi32, #tpu.memory_space<smem>>, %arg3: memref<1xi32, #tpu.memory_space<smem>>) -> (i32, i32) {
    %c0_i32 = arith.constant 0 : i32
    %c0_i32_0 = arith.constant 0 : i32
    %c0_i32_1 = arith.constant 0 : i32
    return %c0_i32, %c0_i32_0 : i32, i32
  }
  func.func @transform_5(%arg0: i32, %arg1: i32, %arg2: memref<12xi32, #tpu.memory_space<smem>>, %arg3: memref<1xi32, #tpu.memory_space<smem>>) -> (i32, i32) {
    %c0_i32 = arith.constant 0 : i32
    %c0_i32_0 = arith.constant 0 : i32
    %c0_i32_1 = arith.constant 0 : i32
    return %c0_i32, %c0_i32_0 : i32, i32
  }
  func.func @transform_6(%arg0: i32, %arg1: i32, %arg2: memref<12xi32, #tpu.memory_space<smem>>, %arg3: memref<1xi32, #tpu.memory_space<smem>>) -> (i32, i32) {
    %c0_i32 = arith.constant 0 : i32
    %c0_i32_0 = arith.constant 0 : i32
    return %arg0, %c0_i32 : i32, i32
  }
}

</mosaic_0001>

<llo_original>
// kernel: tpu_custom_call.1
$region0: #{tpu_custom_call.1}
  #allocation0 [shape = 'u32[]', space=smem, size = 0x4, offset = 0x4, fixed_abs, tag = 'smem constant byte address 0x4 - core index']
  #allocation1 [shape = 'u32[72,128]{1,0:T(1,128)}', space=vmem, size = 0x9000, scoped, tag = 'internal scratch']
  #allocation2 [shape = 'f32[2,128,128]{2,1,0:T(8,128)}', space=vmem, size = 0x20000, scoped, tag = 'scratch operand']
  #allocation3 [shape = 's32[1]{0}', space=sflag, size = 0x4, scoped, tag = 'scoped memory for tpu_custom_call.1']
  #allocation4 [shape = 'u8[512]{0}', space=smem, size = 0x200, scoped, tag = 'prefetched SMEM operand 0']
  #allocation5 [shape = 's32[1]{0:T(128)S(6)}', space=smem, size = 0x200, scoped, tag = 'prefetched SMEM operand 1']
  %s0 = inlined_call_operand.vmem [shape: s32[12], index: 0, kind: input, shape index: {}]
  %s1 = inlined_call_operand.<no memory space> [shape: s32[1], index: 1, kind: input, shape index: {}]
  %s2 = inlined_call_operand.hbm [shape: bf16[12,128,128], index: 2, kind: input, shape index: {}]
  %s3 = inlined_call_operand.hbm [shape: bf16[128,128], index: 3, kind: input, shape index: {}]
  %s4 = inlined_call_operand.hbm [shape: f32[12,1,128], index: 4, kind: input, shape index: {}]
  %s5 = inlined_call_operand.hbm [shape: bf16[2,128,128], index: 5, kind: input, shape index: {}]
  %s6 = inlined_call_operand.hbm [shape: bf16[128,128], index: 6, kind: input, shape index: {}]
  %s7 = inlined_call_operand.vmem [shape: f32[1,128], index: 7, kind: input, shape index: {}]
  %s8 = inlined_call_operand.hbm [shape: f32[128,128], index: 8, kind: output, shape index: {}]
  %s9 = sld [smem:[#allocation0]]
  $region89: #{tpu_custom_call.1} parent=0
    _
  %s11 = ssub.s32 1, %s9
  %s12 = scalar_select 0, %s11, %s9
  %s14 = sshll.u32 %s0, 4
  %s15 = int_to_ptr.vmem [resolvable:$true] %s14
  %17 = dma.vmem_to_smem %s15, 16, [#allocation4], [#allocation3]
  %18 = sst [smem:[#allocation5]] %s1
  %20 = dma.done [#allocation3], 16
  %21 = sfence
  $region1: #{tpu_custom_call.1} parent=0
    #allocation6 [shape = 'u8[65536]{0}', space=vmem, size = 0x10000, scoped, tag = 'input window, operand 2']
    #allocation7 [shape = 's32[2]{0}', space=sflag, size = 0x8, scoped, tag = 'scoped memory for tpu_custom_call.1']
    #allocation8 [shape = 's32[2]{0}', space=sflag, size = 0x8, scoped, tag = 'scoped memory for tpu_custom_call.1']
    #allocation9 [shape = 'u8[32768]{0}', space=vmem, size = 0x8000, scoped, tag = 'input window, operand 3, single buffered']
    #allocation10 [shape = 's32[1]{0}', space=sflag, size = 0x4, scoped, tag = 'scoped memory for tpu_custom_call.1']
    #allocation11 [shape = 'u8[1024]{0}', space=vmem, size = 0x400, scoped, tag = 'input window, operand 4']
    #allocation12 [shape = 'u8[65536]{0}', space=vmem, size = 0x10000, scoped, tag = 'input window, operand 5, single buffered']
    #allocation13 [shape = 'u8[32768]{0}', space=vmem, size = 0x8000, scoped, tag = 'input window, operand 6, single buffered']
    #allocation14 [shape = 's32[1]{0}', space=sflag, size = 0x4, scoped, tag = 'scoped memory for tpu_custom_call.1']
    #allocation15 [shape = 'u8[65536]{0}', space=vmem, size = 0x10000, scoped, tag = 'output window, operand 0, single buffered']
    %22 = vsyncpa [#allocation7], 0
    %s23 = scalar_lea.sflag [#allocation7], 1
    %24 = vsyncpa %s23, 0
    %25 = vsyncpa [#allocation10], 0
    %26 = vsyncpa [#allocation14], 0
    %27 = vsyncpa [#allocation8], 0
    loop: start=0, step=1, limit=10
    $region2: #{tpu_custom_call.1} parent=1 // loop_pre_header
      _
    $region3: #{tpu_custom_call.1} parent=1 // loop_header
      %s29 = sphi 0, %s33
      %p30 = scmp.ge.s32.totalorder %s29, 10
      %s36 = sphi 0, %s48
      %s37 = sphi 0, %s44
      %s38 = sphi 0, %s36
      %s39 = sphi 0, %s37
      %s40 = sphi 0, %s38
      %s41 = sphi 0, %s39
      %s59 = sphi 0, %s61
      %s62 = sphi 0, %s59
      %s63 = sphi 0, %s62
      %s79 = sphi 0, %s63
      %s83 = sphi 0, %s83
      %s85 = sphi 0, %s83
      %s86 = sphi 0, %s85
      %s100 = sphi 0, %s86
      %s112 = sphi 0, %s114
      %s115 = sphi 0, %s112
      %s116 = sphi 0, %s115
      %s132 = sphi 0, %s116
      %s136 = sphi 0, %s136
      %s138 = sphi 0, %s136
      %s139 = sphi 0, %s138
      %s153 = sphi 0, %s139
      %s157 = sphi 0, %s157
      %s159 = sphi 0, %s157
      %s160 = sphi 0, %s159
      %s174 = sphi 0, %s160
      %s178 = sphi 0, %s178
      %s180 = sphi 0, %s178
      %s181 = sphi 0, %s180
      %s195 = sphi 0, %s181
      %s201 = sphi 0, %s203
      %s204 = sphi 0, %s201
      %s205 = sphi 0, %s204
      %s221 = sphi 0, %s205
    $region4: #{tpu_custom_call.1} parent=1 // loop_header_branch
      %32 = sbr.rel (%p30) target = $region8
    $region5: #{tpu_custom_call.1} parent=1 // loop_body
      %s34 = ssub.s32 %s29, 1
      %s35 = ssub.s32 %s29, 2
      %s42 = sadd.s32 1, %s37
      %p43 = scmp.ge.s32.totalorder %s42, 8
      %s44 = scalar_select %p43, 0, %s42
      %s45 = sadd.s32 1, %s36
      %s46 = scalar_select %p43, %s45, %s36
      %p47 = scmp.ge.s32.totalorder %s46, 1
      %s48 = scalar_select %p47, 0, %s46
      %s49 = smul.u32 %s36, 12
      %s50 = sadd.s32 %s49, %s37
      %s51 = sld [smem:[#allocation4 + %s50]]
      %s52 = smul.u32 %s48, 12
      %s53 = sadd.s32 %s52, %s44
      %s54 = sld [smem:[#allocation4 + %s53]]
      %s55 = ssub.s32 %s51, %s54
      %s56 = ssub.s32 %s36, %s48
      %s57 = sor.u32 %s55, %s56
      %p58 = scmp.eq.s32.totalorder %s57, 0
      %s60 = sadd.s32 %s59, 1
      %s61 = scalar_select %p58, %s59, %s60
      %p64 = pneg %p58
      %p65 = scmp.eq.s32.totalorder %s29, 7
      %p66 = por %p64, %p65
      %p67 = scmp.ne.s32.totalorder %s59, %s62
      %p68 = scmp.eq.s32.totalorder %s29, 0
      %p69 = por %p67, %p68
      %p70 = scmp.ne.s32.totalorder %s59, %s62
      %p71 = scmp.eq.s32.totalorder %s34, 7
      %p72 = por %p70, %p71
      %p73 = scmp.ne.s32.totalorder %s62, %s63
      %p74 = scmp.eq.s32.totalorder %s34, 0
      %p75 = por %p73, %p74
      %p76 = scmp.ne.s32.totalorder %s62, %s63
      %p77 = scmp.eq.s32.totalorder %s35, 7
      %p78 = por %p76, %p77
      %p80 = scmp.ne.s32.totalorder %s63, %s79
      %p81 = scmp.eq.s32.totalorder %s35, 0
      %p82 = por %p80, %p81
      %s84 = sadd.s32 %s83, 1
      %p87 = scmp.eq.s32.totalorder %s29, 7
      %p88 = scmp.ne.s32.totalorder %s83, %s85
      %p89 = scmp.eq.s32.totalorder %s29, 0
      %p90 = por %p88, %p89
      %p91 = scmp.ne.s32.totalorder %s83, %s85
      %p92 = scmp.eq.s32.totalorder %s34, 7
      %p93 = por %p91, %p92
      %p94 = scmp.ne.s32.totalorder %s85, %s86
      %p95 = scmp.eq.s32.totalorder %s34, 0
      %p96 = por %p94, %p95
      %p97 = scmp.ne.s32.totalorder %s85, %s86
      %p98 = scmp.eq.s32.totalorder %s35, 7
      %p99 = por %p97, %p98
      %p101 = scmp.ne.s32.totalorder %s86, %s100
      %p102 = scmp.eq.s32.totalorder %s35, 0
      %p103 = por %p101, %p102
      %s104 = smul.u32 %s36, 12
      %s105 = sadd.s32 %s104, %s37
      %s106 = sld [smem:[#allocation4 + %s105]]
      %s107 = smul.u32 %s48, 12
      %s108 = sadd.s32 %s107, %s44
      %s109 = sld [smem:[#allocation4 + %s108]]
      %s110 = ssub.s32 %s106, %s109
      %p111 = scmp.eq.s32.totalorder %s110, 0
      %s113 = sadd.s32 %s112, 1
      %s114 = scalar_select %p111, %s112, %s113
      %p117 = pneg %p111
      %p118 = scmp.eq.s32.totalorder %s29, 7
      %p119 = por %p117, %p118
      %p120 = scmp.ne.s32.totalorder %s112, %s115
      %p121 = scmp.eq.s32.totalorder %s29, 0
      %p122 = por %p120, %p121
      %p123 = scmp.ne.s32.totalorder %s112, %s115
      %p124 = scmp.eq.s32.totalorder %s34, 7
      %p125 = por %p123, %p124
      %p126 = scmp.ne.s32.totalorder %s115, %s116
      %p127 = scmp.eq.s32.totalorder %s34, 0
      %p128 = por %p126, %p127
      %p129 = scmp.ne.s32.totalorder %s115, %s116
      %p130 = scmp.eq.s32.totalorder %s35, 7
      %p131 = por %p129, %p130
      %p133 = scmp.ne.s32.totalorder %s116, %s132
      %p134 = scmp.eq.s32.totalorder %s35, 0
      %p135 = por %p133, %p134
      %s137 = sadd.s32 %s136, 1
      %p140 = scmp.eq.s32.totalorder %s29, 7
      %p141 = scmp.ne.s32.totalorder %s136, %s138
      %p142 = scmp.eq.s32.totalorder %s29, 0
      %p143 = por %p141, %p142
      %p144 = scmp.ne.s32.totalorder %s136, %s138
      %p145 = scmp.eq.s32.totalorder %s34, 7
      %p146 = por %p144, %p145
      %p147 = scmp.ne.s32.totalorder %s138, %s139
      %p148 = scmp.eq.s32.totalorder %s34, 0
      %p149 = por %p147, %p148
      %p150 = scmp.ne.s32.totalorder %s138, %s139
      %p151 = scmp.eq.s32.totalorder %s35, 7
      %p152 = por %p150, %p151
      %p154 = scmp.ne.s32.totalorder %s139, %s153
      %p155 = scmp.eq.s32.totalorder %s35, 0
      %p156 = por %p154, %p155
      %s158 = sadd.s32 %s157, 1
      %p161 = scmp.eq.s32.totalorder %s29, 7
      %p162 = scmp.ne.s32.totalorder %s157, %s159
      %p163 = scmp.eq.s32.totalorder %s29, 0
      %p164 = por %p162, %p163
      %p165 = scmp.ne.s32.totalorder %s157, %s159
      %p166 = scmp.eq.s32.totalorder %s34, 7
      %p167 = por %p165, %p166
      %p168 = scmp.ne.s32.totalorder %s159, %s160
      %p169 = scmp.eq.s32.totalorder %s34, 0
      %p170 = por %p168, %p169
      %p171 = scmp.ne.s32.totalorder %s159, %s160
      %p172 = scmp.eq.s32.totalorder %s35, 7
      %p173 = por %p171, %p172
      %p175 = scmp.ne.s32.totalorder %s160, %s174
      %p176 = scmp.eq.s32.totalorder %s35, 0
      %p177 = por %p175, %p176
      %s179 = sadd.s32 %s178, 1
      %p182 = scmp.eq.s32.totalorder %s29, 7
      %p183 = scmp.ne.s32.totalorder %s178, %s180
      %p184 = scmp.eq.s32.totalorder %s29, 0
      %p185 = por %p183, %p184
      %p186 = scmp.ne.s32.totalorder %s178, %s180
      %p187 = scmp.eq.s32.totalorder %s34, 7
      %p188 = por %p186, %p187
      %p189 = scmp.ne.s32.totalorder %s180, %s181
      %p190 = scmp.eq.s32.totalorder %s34, 0
      %p191 = por %p189, %p190
      %p192 = scmp.ne.s32.totalorder %s180, %s181
      %p193 = scmp.eq.s32.totalorder %s35, 7
      %p194 = por %p192, %p193
      %p196 = scmp.ne.s32.totalorder %s181, %s195
      %p197 = scmp.eq.s32.totalorder %s35, 0
      %p198 = por %p196, %p197
      %s199 = ssub.s32 %s36, %s48
      %p200 = scmp.eq.s32.totalorder %s199, 0
      %s202 = sadd.s32 %s201, 1
      %s203 = scalar_select %p200, %s201, %s202
      %p206 = pneg %p200
      %p207 = scmp.eq.s32.totalorder %s29, 7
      %p208 = por %p206, %p207
      %p209 = scmp.ne.s32.totalorder %s201, %s204
      %p210 = scmp.eq.s32.totalorder %s29, 0
      %p211 = por %p209, %p210
      %p212 = scmp.ne.s32.totalorder %s201, %s204
      %p213 = scmp.eq.s32.totalorder %s34, 7
      %p214 = por %p212, %p213
      %p215 = scmp.ne.s32.totalorder %s204, %s205
      %p216 = scmp.eq.s32.totalorder %s34, 0
      %p217 = por %p215, %p216
      %p218 = scmp.ne.s32.totalorder %s204, %s205
      %p219 = scmp.eq.s32.totalorder %s35, 7
      %p220 = por %p218, %p219
      %p222 = scmp.ne.s32.totalorder %s205, %s221
      %p223 = scmp.eq.s32.totalorder %s35, 0
      %p224 = por %p222, %p223
      %p225 = scmp.le.s32.totalorder 1, %s29
      %p226 = scmp.lt.s32.totalorder %s29, 9
      %p227 = pnand %p225, %p226
      %p228 = pneg %p227
      // Predicated region
      $region9: #{tpu_custom_call.1} parent=5 // pred_check
        _
      $region10: #{tpu_custom_call.1} parent=5 // pred_check_branch
        %230 = sbr.rel (%p227) target = $region12
      $region11: #{tpu_custom_call.1} parent=5 // pred_region
        %s231 = ssub.s32 %s29, 1
        // Predicated region
        $region13: #{tpu_custom_call.1} parent=11 // pred_check
          %p232 = pneg %p96
        $region14: #{tpu_custom_call.1} parent=11 // pred_check_branch
          %234 = sbr.rel (%p232) target = $region16
        $region15: #{tpu_custom_call.1} parent=11 // pred_region
          %236 = vsyncadd [#allocation10], 0
          %s237 = sshll.u32 %s3, 4
          %s238 = int_to_ptr.hbm [resolvable:$true] %s237
          %s239 = sshll.u32 [#allocation9], 4
          %s240 = int_to_ptr.vmem [resolvable:$true] %s239
          %245 = dma.hbm_to_vmem [thread:$0]  %s238, 1024, %s240, [#allocation10], 64, 64, 4
        $region16: #{tpu_custom_call.1} parent=11 // pred_fallthru
          _
        // Predicated region
        $region17: #{tpu_custom_call.1} parent=11 // pred_check
          %p246 = pneg %p149
        $region18: #{tpu_custom_call.1} parent=11 // pred_check_branch
          %248 = sbr.rel (%p246) target = $region20
        $region19: #{tpu_custom_call.1} parent=11 // pred_region
          %250 = vsyncadd [#allocation10], 0
          %s251 = sshll.u32 %s5, 4
          %s252 = int_to_ptr.hbm [resolvable:$true] %s251
          %s253 = sshll.u32 [#allocation12], 4
          %s254 = int_to_ptr.vmem [resolvable:$true] %s253
          %259 = dma.hbm_to_vmem [thread:$0]  %s252, 2048, %s254, [#allocation10], 64, 64, 4
        $region20: #{tpu_custom_call.1} parent=11 // pred_fallthru
          _
        // Predicated region
        $region21: #{tpu_custom_call.1} parent=11 // pred_check
          %p260 = pneg %p170
        $region22: #{tpu_custom_call.1} parent=11 // pred_check_branch
          %262 = sbr.rel (%p260) target = $region24
        $region23: #{tpu_custom_call.1} parent=11 // pred_region
          %264 = vsyncadd [#allocation14], 0
          %s265 = sshll.u32 %s6, 4
          %s266 = int_to_ptr.hbm [resolvable:$true] %s265
          %s267 = sshll.u32 [#allocation13], 4
          %s268 = int_to_ptr.vmem [resolvable:$true] %s267
          %273 = dma.hbm_to_vmem [thread:$0]  %s266, 1024, %s268, [#allocation14], 64, 64, 4
        $region24: #{tpu_custom_call.1} parent=11 // pred_fallthru
          _
        // Predicated region
        $region25: #{tpu_custom_call.1} parent=11 // pred_check
          %p274 = pneg %p191
        $region26: #{tpu_custom_call.1} parent=11 // pred_check_branch
          %276 = sbr.rel (%p274) target = $region28
        $region27: #{tpu_custom_call.1} parent=11 // pred_region
          _
        $region28: #{tpu_custom_call.1} parent=11 // pred_fallthru
          _
      $region12: #{tpu_custom_call.1} parent=5 // pred_fallthru
        _
      %p277 = scmp.lt.s32.totalorder %s29, 8
      // Predicated region
      $region29: #{tpu_custom_call.1} parent=5 // pred_check
        %p278 = pneg %p277
      $region30: #{tpu_custom_call.1} parent=5 // pred_check_branch
        %280 = sbr.rel (%p278) target = $region32
      $region31: #{tpu_custom_call.1} parent=5 // pred_region
        // Predicated region
        $region33: #{tpu_custom_call.1} parent=31 // pred_check
          %p281 = pneg %p69
        $region34: #{tpu_custom_call.1} parent=31 // pred_check_branch
          %283 = sbr.rel (%p281) target = $region36
        $region35: #{tpu_custom_call.1} parent=31 // pred_region
          %s284 = sand.u32 %s29, 1
          %s285 = scalar_lea.sflag [#allocation7], %s284
          %s286 = sand.u32 %s59, 1
          %s287 = smul.addr %s286, 64
          %s288 = scalar_lea.vmem [#allocation6], %s287
          %s289 = smul.u32 %s36, 12
          %s290 = sadd.s32 %s289, %s37
          %s291 = sld [smem:[#allocation4 + %s290]]
          %s292 = smul.u32 16, %s36
          %294 = vsyncadd %s285, 0
          %s295 = smul.addr %s291, 16
          %s296 = sadd.s32 %s292, %s295
          %s297 = smul.addr %s296, 4
          %s298 = scalar_lea.hbm %s2, %s297
          %s299 = sshll.u32 %s298, 4
          %s300 = int_to_ptr.hbm [resolvable:$true] %s299
          %s301 = sshll.u32 %s288, 4
          %s302 = int_to_ptr.vmem [resolvable:$true] %s301
          %307 = dma.hbm_to_vmem [thread:$0]  %s300, 1024, %s302, %s285, 64, 64, 4
        $region36: #{tpu_custom_call.1} parent=31 // pred_fallthru
          _
        // Predicated region
        $region37: #{tpu_custom_call.1} parent=31 // pred_check
          %p308 = pneg %p122
        $region38: #{tpu_custom_call.1} parent=31 // pred_check_branch
          %310 = sbr.rel (%p308) target = $region40
        $region39: #{tpu_custom_call.1} parent=31 // pred_region
          %s311 = sand.u32 %s29, 1
          %s312 = scalar_lea.sflag [#allocation7], %s311
          %s313 = sand.u32 %s112, 1
          %s314 = scalar_lea.vmem [#allocation11], %s313
          %s315 = smul.u32 %s36, 12
          %s316 = sadd.s32 %s315, %s37
          %s317 = sld [smem:[#allocation4 + %s316]]
          %319 = vsyncadd %s312, 0
          %s320 = scalar_lea.hbm %s4, %s317
          %s322 = sshll.u32 %s320, 4
          %s323 = int_to_ptr.hbm [resolvable:$true] %s322
          %s324 = sshll.u32 %s314, 4
          %s325 = int_to_ptr.vmem [resolvable:$true] %s324
          %327 = dma.hbm_to_vmem [thread:$0]  %s323, 16, %s325, %s312
        $region40: #{tpu_custom_call.1} parent=31 // pred_fallthru
          _
      $region32: #{tpu_custom_call.1} parent=5 // pred_fallthru
        _
      %p328 = scmp.le.s32.totalorder 1, %s29
      %p329 = scmp.lt.s32.totalorder %s29, 9
      %p330 = pnand %p328, %p329
      %p331 = pneg %p330
      // Predicated region
      $region41: #{tpu_custom_call.1} parent=5 // pred_check
        _
      $region42: #{tpu_custom_call.1} parent=5 // pred_check_branch
        %333 = sbr.rel (%p330) target = $region44
      $region43: #{tpu_custom_call.1} parent=5 // pred_region
        %s334 = ssub.s32 %s29, 1
        %s335 = sand.u32 %s34, 1
        %s336 = scalar_lea.sflag [#allocation7], %s335
        %s337 = sand.u32 %s62, 1
        %s338 = smul.addr %s337, 64
        %s339 = scalar_lea.vmem [#allocation6], %s338
        // Predicated region
        $region45: #{tpu_custom_call.1} parent=43 // pred_check
          %p340 = pneg %p75
        $region46: #{tpu_custom_call.1} parent=43 // pred_check_branch
          %342 = sbr.rel (%p340) target = $region48
        $region47: #{tpu_custom_call.1} parent=43 // pred_region
          %344 = dma.done %s336, 1024
        $region48: #{tpu_custom_call.1} parent=43 // pred_fallthru
          _
        // Predicated region
        $region49: #{tpu_custom_call.1} parent=43 // pred_check
          %p345 = pneg %p96
        $region50: #{tpu_custom_call.1} parent=43 // pred_check_branch
          %347 = sbr.rel (%p345) target = $region52
        $region51: #{tpu_custom_call.1} parent=43 // pred_region
          %349 = dma.done [#allocation10], 1024
        $region52: #{tpu_custom_call.1} parent=43 // pred_fallthru
          _
        %s350 = sand.u32 %s34, 1
        %s351 = scalar_lea.sflag [#allocation7], %s350
        %s352 = sand.u32 %s115, 1
        %s353 = scalar_lea.vmem [#allocation11], %s352
        // Predicated region
        $region53: #{tpu_custom_call.1} parent=43 // pred_check
          %p354 = pneg %p128
        $region54: #{tpu_custom_call.1} parent=43 // pred_check_branch
          %356 = sbr.rel (%p354) target = $region56
        $region55: #{tpu_custom_call.1} parent=43 // pred_region
          %358 = dma.done %s351, 16
        $region56: #{tpu_custom_call.1} parent=43 // pred_fallthru
          _
        // Predicated region
        $region57: #{tpu_custom_call.1} parent=43 // pred_check
          %p359 = pneg %p149
        $region58: #{tpu_custom_call.1} parent=43 // pred_check_branch
          %361 = sbr.rel (%p359) target = $region60
        $region59: #{tpu_custom_call.1} parent=43 // pred_region
          %363 = dma.done [#allocation10], 2048
        $region60: #{tpu_custom_call.1} parent=43 // pred_fallthru
          _
        // Predicated region
        $region61: #{tpu_custom_call.1} parent=43 // pred_check
          %p364 = pneg %p170
        $region62: #{tpu_custom_call.1} parent=43 // pred_check_branch
          %366 = sbr.rel (%p364) target = $region64
        $region63: #{tpu_custom_call.1} parent=43 // pred_region
          %368 = dma.done [#allocation14], 1024
        $region64: #{tpu_custom_call.1} parent=43 // pred_fallthru
          _
        %s369 = sand.u32 %s34, 1
        %s370 = scalar_lea.sflag [#allocation7], %s369
        %s371 = sand.u32 %s62, 1
        %s372 = smul.addr %s371, 64
        %s373 = scalar_lea.vmem [#allocation6], %s372
        %p374 = pneg %p75
        %p375 = pneg %p72
        %p376 = pneg %p96
        %p377 = pneg %p93
        %s378 = sand.u32 %s34, 1
        %s379 = scalar_lea.sflag [#allocation7], %s378
        %s380 = sand.u32 %s115, 1
        %s381 = scalar_lea.vmem [#allocation11], %s380
        %p382 = pneg %p128
        %p383 = pneg %p125
        %p384 = pneg %p149
        %p385 = pneg %p146
        %p386 = pneg %p170
        %p387 = pneg %p167
        %p388 = pneg %p191
        %p389 = pneg %p188
        %p390 = pneg %p217
        %p391 = pneg %p214
        %s392 = smul.u32 %s38, 12
        %s393 = sadd.s32 %s392, %s39
        %s394 = sld [smem:[#allocation4 + %s393]]
        %s395 = smul.u32 16, %s38
        %s396 = smul.u32 %s38, 12
        %s397 = sadd.s32 %s396, %s39
        %s398 = sld [smem:[#allocation4 + %s397]]
        %s399 = smul.u32 16, %s38
        %p400 = scmp.eq.s32.totalorder %s39, 0
        // Predicated region
        $region65: #{tpu_custom_call.1} parent=43 // pred_check
          %p401 = pneg %p400
        $region66: #{tpu_custom_call.1} parent=43 // pred_check_branch
          %403 = sbr.rel (%p401) target = $region68
        $region67: #{tpu_custom_call.1} parent=43 // pred_region
          %404 = vst [vmem:[#allocation2] sm:$0xff] 0.0
          %405 = vst [vmem:[#allocation2 + $0x8] sm:$0xff] 0.0
          %406 = vst [vmem:[#allocation2 + $0x10] sm:$0xff] 0.0
          %407 = vst [vmem:[#allocation2 + $0x18] sm:$0xff] 0.0
          %408 = vst [vmem:[#allocation2 + $0x20] sm:$0xff] 0.0
          %409 = vst [vmem:[#allocation2 + $0x28] sm:$0xff] 0.0
          %410 = vst [vmem:[#allocation2 + $0x30] sm:$0xff] 0.0
          %411 = vst [vmem:[#allocation2 + $0x38] sm:$0xff] 0.0
          %412 = vst [vmem:[#allocation2 + $0x40] sm:$0xff] 0.0
          %413 = vst [vmem:[#allocation2 + $0x48] sm:$0xff] 0.0
          %414 = vst [vmem:[#allocation2 + $0x50] sm:$0xff] 0.0
          %415 = vst [vmem:[#allocation2 + $0x58] sm:$0xff] 0.0
          %416 = vst [vmem:[#allocation2 + $0x60] sm:$0xff] 0.0
          %417 = vst [vmem:[#allocation2 + $0x68] sm:$0xff] 0.0
          %418 = vst [vmem:[#allocation2 + $0x70] sm:$0xff] 0.0
          %419 = vst [vmem:[#allocation2 + $0x78] sm:$0xff] 0.0
          %420 = vst [vmem:[#allocation2 + $0x80] sm:$0xff] 0.0
          %421 = vst [vmem:[#allocation2 + $0x88] sm:$0xff] 0.0
          %422 = vst [vmem:[#allocation2 + $0x90] sm:$0xff] 0.0
          %423 = vst [vmem:[#allocation2 + $0x98] sm:$0xff] 0.0
          %424 = vst [vmem:[#allocation2 + $0xa0] sm:$0xff] 0.0
          %425 = vst [vmem:[#allocation2 + $0xa8] sm:$0xff] 0.0
          %426 = vst [vmem:[#allocation2 + $0xb0] sm:$0xff] 0.0
          %427 = vst [vmem:[#allocation2 + $0xb8] sm:$0xff] 0.0
          %428 = vst [vmem:[#allocation2 + $0xc0] sm:$0xff] 0.0
          %429 = vst [vmem:[#allocation2 + $0xc8] sm:$0xff] 0.0
          %430 = vst [vmem:[#allocation2 + $0xd0] sm:$0xff] 0.0
          %431 = vst [vmem:[#allocation2 + $0xd8] sm:$0xff] 0.0
          %432 = vst [vmem:[#allocation2 + $0xe0] sm:$0xff] 0.0
          %433 = vst [vmem:[#allocation2 + $0xe8] sm:$0xff] 0.0
          %434 = vst [vmem:[#allocation2 + $0xf0] sm:$0xff] 0.0
          %435 = vst [vmem:[#allocation2 + $0xf8] sm:$0xff] 0.0
        $region68: #{tpu_custom_call.1} parent=43 // pred_fallthru
          _
        %s436 = sld [smem:[#allocation5 + %s38]]
        %p437 = scmp.lt.s32.totalorder %s39, %s436
        // Predicated region
        $region69: #{tpu_custom_call.1} parent=43 // pred_check
          %p438 = pneg %p437
        $region70: #{tpu_custom_call.1} parent=43 // pred_check_branch
          %440 = sbr.rel (%p438) target = $region72
        $region71: #{tpu_custom_call.1} parent=43 // pred_region
          %v441 = vld [vmem:[%s339] sm:$0xf]
          %v442 = vld [vmem:[%s339 + $0x4] sm:$0xf]
          %v443 = vld [vmem:[%s339 + $0x8] sm:$0xf]
          %v444 = vld [vmem:[%s339 + $0xc] sm:$0xf]
          %v445 = vld [vmem:[%s339 + $0x10] sm:$0xf]
          %v446 = vld [vmem:[%s339 + $0x14] sm:$0xf]
          %v447 = vld [vmem:[%s339 + $0x18] sm:$0xf]
          %v448 = vld [vmem:[%s339 + $0x1c] sm:$0xf]
          %v449 = vld [vmem:[%s339 + $0x20] sm:$0xf]
          %v450 = vld [vmem:[%s339 + $0x24] sm:$0xf]
          %v451 = vld [vmem:[%s339 + $0x28] sm:$0xf]
          %v452 = vld [vmem:[%s339 + $0x2c] sm:$0xf]
          %v453 = vld [vmem:[%s339 + $0x30] sm:$0xf]
          %v454 = vld [vmem:[%s339 + $0x34] sm:$0xf]
          %v455 = vld [vmem:[%s339 + $0x38] sm:$0xf]
          %v456 = vld [vmem:[%s339 + $0x3c] sm:$0xf]
          %v457 = vld [vmem:[#allocation9] sm:$0xf]
          %v458 = vld [vmem:[#allocation9 + $0x4] sm:$0xf]
          %v459 = vld [vmem:[#allocation9 + $0x8] sm:$0xf]
          %v460 = vld [vmem:[#allocation9 + $0xc] sm:$0xf]
          %v461 = vld [vmem:[#allocation9 + $0x10] sm:$0xf]
          %v462 = vld [vmem:[#allocation9 + $0x14] sm:$0xf]
          %v463 = vld [vmem:[#allocation9 + $0x18] sm:$0xf]
          %v464 = vld [vmem:[#allocation9 + $0x1c] sm:$0xf]
          %v465 = vld [vmem:[#allocation9 + $0x20] sm:$0xf]
          %v466 = vld [vmem:[#allocation9 + $0x24] sm:$0xf]
          %v467 = vld [vmem:[#allocation9 + $0x28] sm:$0xf]
          %v468 = vld [vmem:[#allocation9 + $0x2c] sm:$0xf]
          %v469 = vld [vmem:[#allocation9 + $0x30] sm:$0xf]
          %v470 = vld [vmem:[#allocation9 + $0x34] sm:$0xf]
          %v471 = vld [vmem:[#allocation9 + $0x38] sm:$0xf]
          %v472 = vld [vmem:[#allocation9 + $0x3c] sm:$0xf]
          %v489 = vunpack.c.l.b16 %v441
          %v490 = vunpack.c.l.b16 %v442
          %v491 = vunpack.c.l.b16 %v443
          %v492 = vunpack.c.l.b16 %v444
          %v493 = vunpack.c.l.b16 %v445
          %v494 = vunpack.c.l.b16 %v446
          %v495 = vunpack.c.l.b16 %v447
          %v496 = vunpack.c.l.b16 %v448
          %v497 = vunpack.c.l.b16 %v449
          %v498 = vunpack.c.l.b16 %v450
          %v499 = vunpack.c.l.b16 %v451
          %v500 = vunpack.c.l.b16 %v452
          %v501 = vunpack.c.l.b16 %v453
          %v502 = vunpack.c.l.b16 %v454
          %v503 = vunpack.c.l.b16 %v455
          %v504 = vunpack.c.l.b16 %v456
          %v505 = vpack.c.b16 %v490, %v489
          %v506 = vpack.c.b16 %v492, %v491
          %v507 = vpack.c.b16 %v494, %v493
          %v508 = vpack.c.b16 %v496, %v495
          %v509 = vpack.c.b16 %v498, %v497
          %v510 = vpack.c.b16 %v500, %v499
          %v511 = vpack.c.b16 %v502, %v501
          %v512 = vpack.c.b16 %v504, %v503
          %v537 = vunpack.c.l.b16 %v457
          %v538 = vunpack.c.l.b16 %v458
          %v539 = vunpack.c.l.b16 %v459
          %v540 = vunpack.c.l.b16 %v460
          %v541 = vunpack.c.l.b16 %v461
          %v542 = vunpack.c.l.b16 %v462
          %v543 = vunpack.c.l.b16 %v463
          %v544 = vunpack.c.l.b16 %v464
          %v545 = vunpack.c.l.b16 %v465
          %v546 = vunpack.c.l.b16 %v466
          %v547 = vunpack.c.l.b16 %v467
          %v548 = vunpack.c.l.b16 %v468
          %v549 = vunpack.c.l.b16 %v469
          %v550 = vunpack.c.l.b16 %v470
          %v551 = vunpack.c.l.b16 %v471
          %v552 = vunpack.c.l.b16 %v472
          %v553 = vpack.c.b16 %v538, %v537
          %v554 = vpack.c.b16 %v540, %v539
          %v555 = vpack.c.b16 %v542, %v541
          %v556 = vpack.c.b16 %v544, %v543
          %v557 = vpack.c.b16 %v546, %v545
          %v558 = vpack.c.b16 %v548, %v547
          %v559 = vpack.c.b16 %v550, %v549
          %v560 = vpack.c.b16 %v552, %v551
          %569 = vmatpush.bf16.msra.mxu0 %v560
          %570 = vmatpush.bf16.msra.mxu0 %v559
          %571 = vmatpush.bf16.msra.mxu0 %v558
          %572 = vmatpush.bf16.msra.mxu0 %v557
          %573 = vmatpush.bf16.msra.mxu0 %v556
          %574 = vmatpush.bf16.msra.mxu0 %v555
          %575 = vmatpush.bf16.msra.mxu0 %v554
          %576 = vmatpush.bf16.msra.mxu0 %v553
          %577 = vmatmul.bf16.gmra.mxu0 %v505
          %v578 = vpop.f32.mrf.mxu0
          %v579 = vadd.f32 0.0, %v578
          %v580 = vpop.f32.mrf.mxu0
          %v581 = vadd.f32 0.0, %v580
          %582 = vmatmul.bf16.gmra.mxu0 %v506
          %v583 = vpop.f32.mrf.mxu0
          %v584 = vadd.f32 0.0, %v583
          %v585 = vpop.f32.mrf.mxu0
          %v586 = vadd.f32 0.0, %v585
          %587 = vmatmul.bf16.gmra.mxu0 %v507
          %v588 = vpop.f32.mrf.mxu0
          %v589 = vadd.f32 0.0, %v588
          %v590 = vpop.f32.mrf.mxu0
          %v591 = vadd.f32 0.0, %v590
          %592 = vmatmul.bf16.gmra.mxu0 %v508
          %v593 = vpop.f32.mrf.mxu0
          %v594 = vadd.f32 0.0, %v593
          %v595 = vpop.f32.mrf.mxu0
          %v596 = vadd.f32 0.0, %v595
          %597 = vmatmul.bf16.gmra.mxu0 %v509
          %v598 = vpop.f32.mrf.mxu0
          %v599 = vadd.f32 0.0, %v598
          %v600 = vpop.f32.mrf.mxu0
          %v601 = vadd.f32 0.0, %v600
          %602 = vmatmul.bf16.gmra.mxu0 %v510
          %v603 = vpop.f32.mrf.mxu0
          %v604 = vadd.f32 0.0, %v603
          %v605 = vpop.f32.mrf.mxu0
          %v606 = vadd.f32 0.0, %v605
          %607 = vmatmul.bf16.gmra.mxu0 %v511
          %v608 = vpop.f32.mrf.mxu0
          %v609 = vadd.f32 0.0, %v608
          %v610 = vpop.f32.mrf.mxu0
          %v611 = vadd.f32 0.0, %v610
          %612 = vmatmul.bf16.gmra.mxu0 %v512
          %v613 = vpop.f32.mrf.mxu0
          %v614 = vadd.f32 0.0, %v613
          %v615 = vpop.f32.mrf.mxu0
          %v616 = vadd.f32 0.0, %v615
          %617 = vdwg.mxu0
          %v618 = vld [vmem:[%s353] sm:$0x1]
          %v619 = vld [vmem:[#allocation2] sm:$0xff]
          %v620 = vld [vmem:[#allocation2 + $0x8] sm:$0xff]
          %v621 = vld [vmem:[#allocation2 + $0x10] sm:$0xff]
          %v622 = vld [vmem:[#allocation2 + $0x18] sm:$0xff]
          %v623 = vld [vmem:[#allocation2 + $0x20] sm:$0xff]
          %v624 = vld [vmem:[#allocation2 + $0x28] sm:$0xff]
          %v625 = vld [vmem:[#allocation2 + $0x30] sm:$0xff]
          %v626 = vld [vmem:[#allocation2 + $0x38] sm:$0xff]
          %v627 = vld [vmem:[#allocation2 + $0x40] sm:$0xff]
          %v628 = vld [vmem:[#allocation2 + $0x48] sm:$0xff]
          %v629 = vld [vmem:[#allocation2 + $0x50] sm:$0xff]
          %v630 = vld [vmem:[#allocation2 + $0x58] sm:$0xff]
          %v631 = vld [vmem:[#allocation2 + $0x60] sm:$0xff]
          %v632 = vld [vmem:[#allocation2 + $0x68] sm:$0xff]
          %v633 = vld [vmem:[#allocation2 + $0x70] sm:$0xff]
          %v634 = vld [vmem:[#allocation2 + $0x78] sm:$0xff]
          %v636 = vperm.slane %v618, 0
          %637 = vset.pattern.permute.xlu0 0
          %638 = vperm.xlu0 %637, %v636
          %v639 = vpop.permute.xlu0 %638
          %v641 = vmul.f32 %v579, %v639
          %v642 = vmul.f32 %v581, %v639
          %v643 = vmul.f32 %v584, %v639
          %v644 = vmul.f32 %v586, %v639
          %v645 = vmul.f32 %v589, %v639
          %v646 = vmul.f32 %v591, %v639
          %v647 = vmul.f32 %v594, %v639
          %v648 = vmul.f32 %v596, %v639
          %v649 = vmul.f32 %v599, %v639
          %v650 = vmul.f32 %v601, %v639
          %v651 = vmul.f32 %v604, %v639
          %v652 = vmul.f32 %v606, %v639
          %v653 = vmul.f32 %v609, %v639
          %v654 = vmul.f32 %v611, %v639
          %v655 = vmul.f32 %v614, %v639
          %v656 = vmul.f32 %v616, %v639
          %v657 = vadd.f32 %v619, %v641
          %v658 = vadd.f32 %v620, %v642
          %v659 = vadd.f32 %v621, %v643
          %v660 = vadd.f32 %v622, %v644
          %v661 = vadd.f32 %v623, %v645
          %v662 = vadd.f32 %v624, %v646
          %v663 = vadd.f32 %v625, %v647
          %v664 = vadd.f32 %v626, %v648
          %v665 = vadd.f32 %v627, %v649
          %v666 = vadd.f32 %v628, %v650
          %v667 = vadd.f32 %v629, %v651
          %v668 = vadd.f32 %v630, %v652
          %v669 = vadd.f32 %v631, %v653
          %v670 = vadd.f32 %v632, %v654
          %v671 = vadd.f32 %v633, %v655
          %v672 = vadd.f32 %v634, %v656
          %673 = vst [vmem:[#allocation2] sm:$0xff] %v657
          %674 = vst [vmem:[#allocation2 + $0x8] sm:$0xff] %v658
          %675 = vst [vmem:[#allocation2 + $0x10] sm:$0xff] %v659
          %676 = vst [vmem:[#allocation2 + $0x18] sm:$0xff] %v660
          %677 = vst [vmem:[#allocation2 + $0x20] sm:$0xff] %v661
          %678 = vst [vmem:[#allocation2 + $0x28] sm:$0xff] %v662
          %679 = vst [vmem:[#allocation2 + $0x30] sm:$0xff] %v663
          %680 = vst [vmem:[#allocation2 + $0x38] sm:$0xff] %v664
          %681 = vst [vmem:[#allocation2 + $0x40] sm:$0xff] %v665
          %682 = vst [vmem:[#allocation2 + $0x48] sm:$0xff] %v666
          %683 = vst [vmem:[#allocation2 + $0x50] sm:$0xff] %v667
          %684 = vst [vmem:[#allocation2 + $0x58] sm:$0xff] %v668
          %685 = vst [vmem:[#allocation2 + $0x60] sm:$0xff] %v669
          %686 = vst [vmem:[#allocation2 + $0x68] sm:$0xff] %v670
          %687 = vst [vmem:[#allocation2 + $0x70] sm:$0xff] %v671
          %688 = vst [vmem:[#allocation2 + $0x78] sm:$0xff] %v672
          %s689 = scalar_lea.vmem [#allocation2], 128
          %v690 = vld [vmem:[%s689] sm:$0xff]
          %v691 = vld [vmem:[%s689 + $0x8] sm:$0xff]
          %v692 = vld [vmem:[%s689 + $0x10] sm:$0xff]
          %v693 = vld [vmem:[%s689 + $0x18] sm:$0xff]
          %v694 = vld [vmem:[%s689 + $0x20] sm:$0xff]
          %v695 = vld [vmem:[%s689 + $0x28] sm:$0xff]
          %v696 = vld [vmem:[%s689 + $0x30] sm:$0xff]
          %v697 = vld [vmem:[%s689 + $0x38] sm:$0xff]
          %v698 = vld [vmem:[%s689 + $0x40] sm:$0xff]
          %v699 = vld [vmem:[%s689 + $0x48] sm:$0xff]
          %v700 = vld [vmem:[%s689 + $0x50] sm:$0xff]
          %v701 = vld [vmem:[%s689 + $0x58] sm:$0xff]
          %v702 = vld [vmem:[%s689 + $0x60] sm:$0xff]
          %v703 = vld [vmem:[%s689 + $0x68] sm:$0xff]
          %v704 = vld [vmem:[%s689 + $0x70] sm:$0xff]
          %v705 = vld [vmem:[%s689 + $0x78] sm:$0xff]
          %706 = vset.pattern.permute.xlu0 1
          %707 = vperm.xlu0 %706, %v636
          %v708 = vpop.permute.xlu0 %707
          %v710 = vmul.f32 %v579, %v708
          %v711 = vmul.f32 %v581, %v708
          %v712 = vmul.f32 %v584, %v708
          %v713 = vmul.f32 %v586, %v708
          %v714 = vmul.f32 %v589, %v708
          %v715 = vmul.f32 %v591, %v708
          %v716 = vmul.f32 %v594, %v708
          %v717 = vmul.f32 %v596, %v708
          %v718 = vmul.f32 %v599, %v708
          %v719 = vmul.f32 %v601, %v708
          %v720 = vmul.f32 %v604, %v708
          %v721 = vmul.f32 %v606, %v708
          %v722 = vmul.f32 %v609, %v708
          %v723 = vmul.f32 %v611, %v708
          %v724 = vmul.f32 %v614, %v708
          %v725 = vmul.f32 %v616, %v708
          %v726 = vadd.f32 %v690, %v710
          %v727 = vadd.f32 %v691, %v711
          %v728 = vadd.f32 %v692, %v712
          %v729 = vadd.f32 %v693, %v713
          %v730 = vadd.f32 %v694, %v714
          %v731 = vadd.f32 %v695, %v715
          %v732 = vadd.f32 %v696, %v716
          %v733 = vadd.f32 %v697, %v717
          %v734 = vadd.f32 %v698, %v718
          %v735 = vadd.f32 %v699, %v719
          %v736 = vadd.f32 %v700, %v720
          %v737 = vadd.f32 %v701, %v721
          %v738 = vadd.f32 %v702, %v722
          %v739 = vadd.f32 %v703, %v723
          %v740 = vadd.f32 %v704, %v724
          %v741 = vadd.f32 %v705, %v725
          %742 = vst [vmem:[%s689] sm:$0xff] %v726
          %743 = vst [vmem:[%s689 + $0x8] sm:$0xff] %v727
          %744 = vst [vmem:[%s689 + $0x10] sm:$0xff] %v728
          %745 = vst [vmem:[%s689 + $0x18] sm:$0xff] %v729
          %746 = vst [vmem:[%s689 + $0x20] sm:$0xff] %v730
          %747 = vst [vmem:[%s689 + $0x28] sm:$0xff] %v731
          %748 = vst [vmem:[%s689 + $0x30] sm:$0xff] %v732
          %749 = vst [vmem:[%s689 + $0x38] sm:$0xff] %v733
          %750 = vst [vmem:[%s689 + $0x40] sm:$0xff] %v734
          %751 = vst [vmem:[%s689 + $0x48] sm:$0xff] %v735
          %752 = vst [vmem:[%s689 + $0x50] sm:$0xff] %v736
          %753 = vst [vmem:[%s689 + $0x58] sm:$0xff] %v737
          %754 = vst [vmem:[%s689 + $0x60] sm:$0xff] %v738
          %755 = vst [vmem:[%s689 + $0x68] sm:$0xff] %v739
          %756 = vst [vmem:[%s689 + $0x70] sm:$0xff] %v740
          %757 = vst [vmem:[%s689 + $0x78] sm:$0xff] %v741
        $region72: #{tpu_custom_call.1} parent=43 // pred_fallthru
          _
        %p758 = scmp.eq.s32.totalorder %s39, 7
        // Predicated region
        $region73: #{tpu_custom_call.1} parent=43 // pred_check
          %p759 = pneg %p758
        $region74: #{tpu_custom_call.1} parent=43 // pred_check_branch
          %761 = sbr.rel (%p759) target = $region76
        $region75: #{tpu_custom_call.1} parent=43 // pred_region
          %s762 = smul.u32 %s38, 128
          %s763 = sshra.s32 %s762, 3
          %s764 = sand.u32 %s762, 7
          %s765 = smul.addr %s763, 4
          %s766 = scalar_lea.vmem [#allocation9], %s765
          %v767 = vld [vmem:[%s766] sm:$0xf]
          %v768 = vld [vmem:[%s766 + $0x4] sm:$0xf]
          %v769 = vld [vmem:[%s766 + $0x8] sm:$0xf]
          %v770 = vld [vmem:[%s766 + $0xc] sm:$0xf]
          %v771 = vld [vmem:[%s766 + $0x10] sm:$0xf]
          %v772 = vld [vmem:[%s766 + $0x14] sm:$0xf]
          %v773 = vld [vmem:[%s766 + $0x18] sm:$0xf]
          %v774 = vld [vmem:[%s766 + $0x1c] sm:$0xf]
          %v775 = vld [vmem:[%s766 + $0x20] sm:$0xf]
          %v776 = vld [vmem:[%s766 + $0x24] sm:$0xf]
          %v777 = vld [vmem:[%s766 + $0x28] sm:$0xf]
          %v778 = vld [vmem:[%s766 + $0x2c] sm:$0xf]
          %v779 = vld [vmem:[%s766 + $0x30] sm:$0xf]
          %v780 = vld [vmem:[%s766 + $0x34] sm:$0xf]
          %v781 = vld [vmem:[%s766 + $0x38] sm:$0xf]
          %v782 = vld [vmem:[%s766 + $0x3c] sm:$0xf]
          %v783 = vld [vmem:[#allocation13] sm:$0xf]
          %v784 = vld [vmem:[#allocation13 + $0x4] sm:$0xf]
          %v785 = vld [vmem:[#allocation13 + $0x8] sm:$0xf]
          %v786 = vld [vmem:[#allocation13 + $0xc] sm:$0xf]
          %v787 = vld [vmem:[#allocation13 + $0x10] sm:$0xf]
          %v788 = vld [vmem:[#allocation13 + $0x14] sm:$0xf]
          %v789 = vld [vmem:[#allocation13 + $0x18] sm:$0xf]
          %v790 = vld [vmem:[#allocation13 + $0x1c] sm:$0xf]
          %v791 = vld [vmem:[#allocation13 + $0x20] sm:$0xf]
          %v792 = vld [vmem:[#allocation13 + $0x24] sm:$0xf]
          %v793 = vld [vmem:[#allocation13 + $0x28] sm:$0xf]
          %v794 = vld [vmem:[#allocation13 + $0x2c] sm:$0xf]
          %v795 = vld [vmem:[#allocation13 + $0x30] sm:$0xf]
          %v796 = vld [vmem:[#allocation13 + $0x34] sm:$0xf]
          %v797 = vld [vmem:[#allocation13 + $0x38] sm:$0xf]
          %v798 = vld [vmem:[#allocation13 + $0x3c] sm:$0xf]
          %v799 = vld [vmem:[%s7] sm:$0x1]
          %v801 = vperm.slane %v799, 0
          %v819 = vunpack.c.l.b16 %v767
          %v820 = vunpack.c.l.b16 %v768
          %v821 = vunpack.c.l.b16 %v769
          %v822 = vunpack.c.l.b16 %v770
          %v823 = vunpack.c.l.b16 %v771
          %v824 = vunpack.c.l.b16 %v772
          %v825 = vunpack.c.l.b16 %v773
          %v826 = vunpack.c.l.b16 %v774
          %v827 = vunpack.c.l.b16 %v775
          %v828 = vunpack.c.l.b16 %v776
          %v829 = vunpack.c.l.b16 %v777
          %v830 = vunpack.c.l.b16 %v778
          %v831 = vunpack.c.l.b16 %v779
          %v832 = vunpack.c.l.b16 %v780
          %v833 = vunpack.c.l.b16 %v781
          %v834 = vunpack.c.l.b16 %v782
          %v835 = vpack.c.b16 %v820, %v819
          %v836 = vpack.c.b16 %v822, %v821
          %v837 = vpack.c.b16 %v824, %v823
          %v838 = vpack.c.b16 %v826, %v825
          %v839 = vpack.c.b16 %v828, %v827
          %v840 = vpack.c.b16 %v830, %v829
          %v841 = vpack.c.b16 %v832, %v831
          %v842 = vpack.c.b16 %v834, %v833
          %v867 = vunpack.c.l.b16 %v783
          %v868 = vunpack.c.l.b16 %v784
          %v869 = vunpack.c.l.b16 %v785
          %v870 = vunpack.c.l.b16 %v786
          %v871 = vunpack.c.l.b16 %v787
          %v872 = vunpack.c.l.b16 %v788
          %v873 = vunpack.c.l.b16 %v789
          %v874 = vunpack.c.l.b16 %v790
          %v875 = vunpack.c.l.b16 %v791
          %v876 = vunpack.c.l.b16 %v792
          %v877 = vunpack.c.l.b16 %v793
          %v878 = vunpack.c.l.b16 %v794
          %v879 = vunpack.c.l.b16 %v795
          %v880 = vunpack.c.l.b16 %v796
          %v881 = vunpack.c.l.b16 %v797
          %v882 = vunpack.c.l.b16 %v798
          %v883 = vpack.c.b16 %v868, %v867
          %v884 = vpack.c.b16 %v870, %v869
          %v885 = vpack.c.b16 %v872, %v871
          %v886 = vpack.c.b16 %v874, %v873
          %v887 = vpack.c.b16 %v876, %v875
          %v888 = vpack.c.b16 %v878, %v877
          %v889 = vpack.c.b16 %v880, %v879
          %v890 = vpack.c.b16 %v882, %v881
          %899 = vmatpush.bf16.msra.mxu0 %v890
          %900 = vmatpush.bf16.msra.mxu0 %v889
          %901 = vmatpush.bf16.msra.mxu0 %v888
          %902 = vmatpush.bf16.msra.mxu0 %v887
          %903 = vmatpush.bf16.msra.mxu0 %v886
          %904 = vmatpush.bf16.msra.mxu0 %v885
          %905 = vmatpush.bf16.msra.mxu0 %v884
          %906 = vmatpush.bf16.msra.mxu0 %v883
          %907 = vmatmul.bf16.gmra.mxu0 %v835
          %v908 = vpop.f32.mrf.mxu0
          %v909 = vadd.f32 %v801, %v908
          %v910 = vpop.f32.mrf.mxu0
          %v911 = vadd.f32 %v801, %v910
          %912 = vmatmul.bf16.gmra.mxu0 %v836
          %v913 = vpop.f32.mrf.mxu0
          %v914 = vadd.f32 %v801, %v913
          %v915 = vpop.f32.mrf.mxu0
          %v916 = vadd.f32 %v801, %v915
          %917 = vmatmul.bf16.gmra.mxu0 %v837
          %v918 = vpop.f32.mrf.mxu0
          %v919 = vadd.f32 %v801, %v918
          %v920 = vpop.f32.mrf.mxu0
          %v921 = vadd.f32 %v801, %v920
          %922 = vmatmul.bf16.gmra.mxu0 %v838
          %v923 = vpop.f32.mrf.mxu0
          %v924 = vadd.f32 %v801, %v923
          %v925 = vpop.f32.mrf.mxu0
          %v926 = vadd.f32 %v801, %v925
          %927 = vmatmul.bf16.gmra.mxu0 %v839
          %v928 = vpop.f32.mrf.mxu0
          %v929 = vadd.f32 %v801, %v928
          %v930 = vpop.f32.mrf.mxu0
          %v931 = vadd.f32 %v801, %v930
          %932 = vmatmul.bf16.gmra.mxu0 %v840
          %v933 = vpop.f32.mrf.mxu0
          %v934 = vadd.f32 %v801, %v933
          %v935 = vpop.f32.mrf.mxu0
          %v936 = vadd.f32 %v801, %v935
          %937 = vmatmul.bf16.gmra.mxu0 %v841
          %v938 = vpop.f32.mrf.mxu0
          %v939 = vadd.f32 %v801, %v938
          %v940 = vpop.f32.mrf.mxu0
          %v941 = vadd.f32 %v801, %v940
          %942 = vmatmul.bf16.gmra.mxu0 %v842
          %v943 = vpop.f32.mrf.mxu0
          %v944 = vadd.f32 %v801, %v943
          %v945 = vpop.f32.mrf.mxu0
          %v946 = vadd.f32 %v801, %v945
          %947 = vdwg.mxu0
          %v948 = vld [vmem:[#allocation2] sm:$0xff]
          %v949 = vld [vmem:[#allocation2 + $0x8] sm:$0xff]
          %v950 = vld [vmem:[#allocation2 + $0x10] sm:$0xff]
          %v951 = vld [vmem:[#allocation2 + $0x18] sm:$0xff]
          %v952 = vld [vmem:[#allocation2 + $0x20] sm:$0xff]
          %v953 = vld [vmem:[#allocation2 + $0x28] sm:$0xff]
          %v954 = vld [vmem:[#allocation2 + $0x30] sm:$0xff]
          %v955 = vld [vmem:[#allocation2 + $0x38] sm:$0xff]
          %v956 = vld [vmem:[#allocation2 + $0x40] sm:$0xff]
          %v957 = vld [vmem:[#allocation2 + $0x48] sm:$0xff]
          %v958 = vld [vmem:[#allocation2 + $0x50] sm:$0xff]
          %v959 = vld [vmem:[#allocation2 + $0x58] sm:$0xff]
          %v960 = vld [vmem:[#allocation2 + $0x60] sm:$0xff]
          %v961 = vld [vmem:[#allocation2 + $0x68] sm:$0xff]
          %v962 = vld [vmem:[#allocation2 + $0x70] sm:$0xff]
          %v963 = vld [vmem:[#allocation2 + $0x78] sm:$0xff]
          %v964 = vpack.c.bf16 %v949, %v948
          %v965 = vpack.c.bf16 %v951, %v950
          %v966 = vpack.c.bf16 %v953, %v952
          %v967 = vpack.c.bf16 %v955, %v954
          %v968 = vpack.c.bf16 %v957, %v956
          %v969 = vpack.c.bf16 %v959, %v958
          %v970 = vpack.c.bf16 %v961, %v960
          %v971 = vpack.c.bf16 %v963, %v962
          %v972 = vld [vmem:[#allocation12] sm:$0xf]
          %v973 = vld [vmem:[#allocation12 + $0x4] sm:$0xf]
          %v974 = vld [vmem:[#allocation12 + $0x8] sm:$0xf]
          %v975 = vld [vmem:[#allocation12 + $0xc] sm:$0xf]
          %v976 = vld [vmem:[#allocation12 + $0x10] sm:$0xf]
          %v977 = vld [vmem:[#allocation12 + $0x14] sm:$0xf]
          %v978 = vld [vmem:[#allocation12 + $0x18] sm:$0xf]
          %v979 = vld [vmem:[#allocation12 + $0x1c] sm:$0xf]
          %v980 = vld [vmem:[#allocation12 + $0x20] sm:$0xf]
          %v981 = vld [vmem:[#allocation12 + $0x24] sm:$0xf]
          %v982 = vld [vmem:[#allocation12 + $0x28] sm:$0xf]
          %v983 = vld [vmem:[#allocation12 + $0x2c] sm:$0xf]
          %v984 = vld [vmem:[#allocation12 + $0x30] sm:$0xf]
          %v985 = vld [vmem:[#allocation12 + $0x34] sm:$0xf]
          %v986 = vld [vmem:[#allocation12 + $0x38] sm:$0xf]
          %v987 = vld [vmem:[#allocation12 + $0x3c] sm:$0xf]
          %v1004 = vunpack.c.l.b16 %v972
          %v1005 = vunpack.c.l.b16 %v973
          %v1006 = vunpack.c.l.b16 %v974
          %v1007 = vunpack.c.l.b16 %v975
          %v1008 = vunpack.c.l.b16 %v976
          %v1009 = vunpack.c.l.b16 %v977
          %v1010 = vunpack.c.l.b16 %v978
          %v1011 = vunpack.c.l.b16 %v979
          %v1012 = vunpack.c.l.b16 %v980
          %v1013 = vunpack.c.l.b16 %v981
          %v1014 = vunpack.c.l.b16 %v982
          %v1015 = vunpack.c.l.b16 %v983
          %v1016 = vunpack.c.l.b16 %v984
          %v1017 = vunpack.c.l.b16 %v985
          %v1018 = vunpack.c.l.b16 %v986
          %v1019 = vunpack.c.l.b16 %v987
          %v1020 = vpack.c.b16 %v1005, %v1004
          %v1021 = vpack.c.b16 %v1007, %v1006
          %v1022 = vpack.c.b16 %v1009, %v1008
          %v1023 = vpack.c.b16 %v1011, %v1010
          %v1024 = vpack.c.b16 %v1013, %v1012
          %v1025 = vpack.c.b16 %v1015, %v1014
          %v1026 = vpack.c.b16 %v1017, %v1016
          %v1027 = vpack.c.b16 %v1019, %v1018
          %1036 = vmatpush.bf16.msra.mxu0 %v1027
          %1037 = vmatpush.bf16.msra.mxu0 %v1026
          %1038 = vmatpush.bf16.msra.mxu0 %v1025
          %1039 = vmatpush.bf16.msra.mxu0 %v1024
          %1040 = vmatpush.bf16.msra.mxu0 %v1023
          %1041 = vmatpush.bf16.msra.mxu0 %v1022
          %1042 = vmatpush.bf16.msra.mxu0 %v1021
          %1043 = vmatpush.bf16.msra.mxu0 %v1020
          %1044 = vmatmul.bf16.gmra.mxu0 %v964
          %v1045 = vpop.f32.mrf.mxu0
          %v1046 = vadd.f32 0.0, %v1045
          %v1047 = vpop.f32.mrf.mxu0
          %v1048 = vadd.f32 0.0, %v1047
          %1049 = vmatmul.bf16.gmra.mxu0 %v965
          %v1050 = vpop.f32.mrf.mxu0
          %v1051 = vadd.f32 0.0, %v1050
          %v1052 = vpop.f32.mrf.mxu0
          %v1053 = vadd.f32 0.0, %v1052
          %1054 = vmatmul.bf16.gmra.mxu0 %v966
          %v1055 = vpop.f32.mrf.mxu0
          %v1056 = vadd.f32 0.0, %v1055
          %v1057 = vpop.f32.mrf.mxu0
          %v1058 = vadd.f32 0.0, %v1057
          %1059 = vmatmul.bf16.gmra.mxu0 %v967
          %v1060 = vpop.f32.mrf.mxu0
          %v1061 = vadd.f32 0.0, %v1060
          %v1062 = vpop.f32.mrf.mxu0
          %v1063 = vadd.f32 0.0, %v1062
          %1064 = vmatmul.bf16.gmra.mxu0 %v968
          %v1065 = vpop.f32.mrf.mxu0
          %v1066 = vadd.f32 0.0, %v1065
          %v1067 = vpop.f32.mrf.mxu0
          %v1068 = vadd.f32 0.0, %v1067
          %1069 = vmatmul.bf16.gmra.mxu0 %v969
          %v1070 = vpop.f32.mrf.mxu0
          %v1071 = vadd.f32 0.0, %v1070
          %v1072 = vpop.f32.mrf.mxu0
          %v1073 = vadd.f32 0.0, %v1072
          %1074 = vmatmul.bf16.gmra.mxu0 %v970
          %v1075 = vpop.f32.mrf.mxu0
          %v1076 = vadd.f32 0.0, %v1075
          %v1077 = vpop.f32.mrf.mxu0
          %v1078 = vadd.f32 0.0, %v1077
          %1079 = vmatmul.bf16.gmra.mxu0 %v971
          %v1080 = vpop.f32.mrf.mxu0
          %v1081 = vadd.f32 0.0, %v1080
          %v1082 = vpop.f32.mrf.mxu0
          %v1083 = vadd.f32 0.0, %v1082
          %1084 = vdwg.mxu0
          %v1085 = vadd.f32 %v909, %v1046
          %v1086 = vadd.f32 %v911, %v1048
          %v1087 = vadd.f32 %v914, %v1051
          %v1088 = vadd.f32 %v916, %v1053
          %v1089 = vadd.f32 %v919, %v1056
          %v1090 = vadd.f32 %v921, %v1058
          %v1091 = vadd.f32 %v924, %v1061
          %v1092 = vadd.f32 %v926, %v1063
          %v1093 = vadd.f32 %v929, %v1066
          %v1094 = vadd.f32 %v931, %v1068
          %v1095 = vadd.f32 %v934, %v1071
          %v1096 = vadd.f32 %v936, %v1073
          %v1097 = vadd.f32 %v939, %v1076
          %v1098 = vadd.f32 %v941, %v1078
          %v1099 = vadd.f32 %v944, %v1081
          %v1100 = vadd.f32 %v946, %v1083
          %s1101 = scalar_lea.vmem [#allocation2], 128
          %v1102 = vld [vmem:[%s1101] sm:$0xff]
          %v1103 = vld [vmem:[%s1101 + $0x8] sm:$0xff]
          %v1104 = vld [vmem:[%s1101 + $0x10] sm:$0xff]
          %v1105 = vld [vmem:[%s1101 + $0x18] sm:$0xff]
          %v1106 = vld [vmem:[%s1101 + $0x20] sm:$0xff]
          %v1107 = vld [vmem:[%s1101 + $0x28] sm:$0xff]
          %v1108 = vld [vmem:[%s1101 + $0x30] sm:$0xff]
          %v1109 = vld [vmem:[%s1101 + $0x38] sm:$0xff]
          %v1110 = vld [vmem:[%s1101 + $0x40] sm:$0xff]
          %v1111 = vld [vmem:[%s1101 + $0x48] sm:$0xff]
          %v1112 = vld [vmem:[%s1101 + $0x50] sm:$0xff]
          %v1113 = vld [vmem:[%s1101 + $0x58] sm:$0xff]
          %v1114 = vld [vmem:[%s1101 + $0x60] sm:$0xff]
          %v1115 = vld [vmem:[%s1101 + $0x68] sm:$0xff]
          %v1116 = vld [vmem:[%s1101 + $0x70] sm:$0xff]
          %v1117 = vld [vmem:[%s1101 + $0x78] sm:$0xff]
          %v1118 = vpack.c.bf16 %v1103, %v1102
          %v1119 = vpack.c.bf16 %v1105, %v1104
          %v1120 = vpack.c.bf16 %v1107, %v1106
          %v1121 = vpack.c.bf16 %v1109, %v1108
          %v1122 = vpack.c.bf16 %v1111, %v1110
          %v1123 = vpack.c.bf16 %v1113, %v1112
          %v1124 = vpack.c.bf16 %v1115, %v1114
          %v1125 = vpack.c.bf16 %v1117, %v1116
          %s1126 = scalar_lea.vmem [#allocation12], 64
          %v1127 = vld [vmem:[%s1126] sm:$0xf]
          %v1128 = vld [vmem:[%s1126 + $0x4] sm:$0xf]
          %v1129 = vld [vmem:[%s1126 + $0x8] sm:$0xf]
          %v1130 = vld [vmem:[%s1126 + $0xc] sm:$0xf]
          %v1131 = vld [vmem:[%s1126 + $0x10] sm:$0xf]
          %v1132 = vld [vmem:[%s1126 + $0x14] sm:$0xf]
          %v1133 = vld [vmem:[%s1126 + $0x18] sm:$0xf]
          %v1134 = vld [vmem:[%s1126 + $0x1c] sm:$0xf]
          %v1135 = vld [vmem:[%s1126 + $0x20] sm:$0xf]
          %v1136 = vld [vmem:[%s1126 + $0x24] sm:$0xf]
          %v1137 = vld [vmem:[%s1126 + $0x28] sm:$0xf]
          %v1138 = vld [vmem:[%s1126 + $0x2c] sm:$0xf]
          %v1139 = vld [vmem:[%s1126 + $0x30] sm:$0xf]
          %v1140 = vld [vmem:[%s1126 + $0x34] sm:$0xf]
          %v1141 = vld [vmem:[%s1126 + $0x38] sm:$0xf]
          %v1142 = vld [vmem:[%s1126 + $0x3c] sm:$0xf]
          %v1159 = vunpack.c.l.b16 %v1127
          %v1160 = vunpack.c.l.b16 %v1128
          %v1161 = vunpack.c.l.b16 %v1129
          %v1162 = vunpack.c.l.b16 %v1130
          %v1163 = vunpack.c.l.b16 %v1131
          %v1164 = vunpack.c.l.b16 %v1132
          %v1165 = vunpack.c.l.b16 %v1133
          %v1166 = vunpack.c.l.b16 %v1134
          %v1167 = vunpack.c.l.b16 %v1135
          %v1168 = vunpack.c.l.b16 %v1136
          %v1169 = vunpack.c.l.b16 %v1137
          %v1170 = vunpack.c.l.b16 %v1138
          %v1171 = vunpack.c.l.b16 %v1139
          %v1172 = vunpack.c.l.b16 %v1140
          %v1173 = vunpack.c.l.b16 %v1141
          %v1174 = vunpack.c.l.b16 %v1142
          %v1175 = vpack.c.b16 %v1160, %v1159
          %v1176 = vpack.c.b16 %v1162, %v1161
          %v1177 = vpack.c.b16 %v1164, %v1163
          %v1178 = vpack.c.b16 %v1166, %v1165
          %v1179 = vpack.c.b16 %v1168, %v1167
          %v1180 = vpack.c.b16 %v1170, %v1169
          %v1181 = vpack.c.b16 %v1172, %v1171
          %v1182 = vpack.c.b16 %v1174, %v1173
          %1191 = vmatpush.bf16.msra.mxu0 %v1182
          %1192 = vmatpush.bf16.msra.mxu0 %v1181
          %1193 = vmatpush.bf16.msra.mxu0 %v1180
          %1194 = vmatpush.bf16.msra.mxu0 %v1179
          %1195 = vmatpush.bf16.msra.mxu0 %v1178
          %1196 = vmatpush.bf16.msra.mxu0 %v1177
          %1197 = vmatpush.bf16.msra.mxu0 %v1176
          %1198 = vmatpush.bf16.msra.mxu0 %v1175
          %1199 = vmatmul.bf16.gmra.mxu0 %v1118
          %v1200 = vpop.f32.mrf.mxu0
          %v1201 = vadd.f32 0.0, %v1200
          %v1202 = vpop.f32.mrf.mxu0
          %v1203 = vadd.f32 0.0, %v1202
          %1204 = vmatmul.bf16.gmra.mxu0 %v1119
          %v1205 = vpop.f32.mrf.mxu0
          %v1206 = vadd.f32 0.0, %v1205
          %v1207 = vpop.f32.mrf.mxu0
          %v1208 = vadd.f32 0.0, %v1207
          %1209 = vmatmul.bf16.gmra.mxu0 %v1120
          %v1210 = vpop.f32.mrf.mxu0
          %v1211 = vadd.f32 0.0, %v1210
          %v1212 = vpop.f32.mrf.mxu0
          %v1213 = vadd.f32 0.0, %v1212
          %1214 = vmatmul.bf16.gmra.mxu0 %v1121
          %v1215 = vpop.f32.mrf.mxu0
          %v1216 = vadd.f32 0.0, %v1215
          %v1217 = vpop.f32.mrf.mxu0
          %v1218 = vadd.f32 0.0, %v1217
          %1219 = vmatmul.bf16.gmra.mxu0 %v1122
          %v1220 = vpop.f32.mrf.mxu0
          %v1221 = vadd.f32 0.0, %v1220
          %v1222 = vpop.f32.mrf.mxu0
          %v1223 = vadd.f32 0.0, %v1222
          %1224 = vmatmul.bf16.gmra.mxu0 %v1123
          %v1225 = vpop.f32.mrf.mxu0
          %v1226 = vadd.f32 0.0, %v1225
          %v1227 = vpop.f32.mrf.mxu0
          %v1228 = vadd.f32 0.0, %v1227
          %1229 = vmatmul.bf16.gmra.mxu0 %v1124
          %v1230 = vpop.f32.mrf.mxu0
          %v1231 = vadd.f32 0.0, %v1230
          %v1232 = vpop.f32.mrf.mxu0
          %v1233 = vadd.f32 0.0, %v1232
          %1234 = vmatmul.bf16.gmra.mxu0 %v1125
          %v1235 = vpop.f32.mrf.mxu0
          %v1236 = vadd.f32 0.0, %v1235
          %v1237 = vpop.f32.mrf.mxu0
          %v1238 = vadd.f32 0.0, %v1237
          %1239 = vdwg.mxu0
          %v1240 = vadd.f32 %v1085, %v1201
          %v1241 = vadd.f32 %v1086, %v1203
          %v1242 = vadd.f32 %v1087, %v1206
          %v1243 = vadd.f32 %v1088, %v1208
          %v1244 = vadd.f32 %v1089, %v1211
          %v1245 = vadd.f32 %v1090, %v1213
          %v1246 = vadd.f32 %v1091, %v1216
          %v1247 = vadd.f32 %v1092, %v1218
          %v1248 = vadd.f32 %v1093, %v1221
          %v1249 = vadd.f32 %v1094, %v1223
          %v1250 = vadd.f32 %v1095, %v1226
          %v1251 = vadd.f32 %v1096, %v1228
          %v1252 = vadd.f32 %v1097, %v1231
          %v1253 = vadd.f32 %v1098, %v1233
          %v1254 = vadd.f32 %v1099, %v1236
          %v1255 = vadd.f32 %v1100, %v1238
          %v1256 = vmax.f32 %v1240, 0.0
          %v1257 = vmax.f32 %v1241, 0.0
          %v1258 = vmax.f32 %v1242, 0.0
          %v1259 = vmax.f32 %v1243, 0.0
          %v1260 = vmax.f32 %v1244, 0.0
          %v1261 = vmax.f32 %v1245, 0.0
          %v1262 = vmax.f32 %v1246, 0.0
          %v1263 = vmax.f32 %v1247, 0.0
          %v1264 = vmax.f32 %v1248, 0.0
          %v1265 = vmax.f32 %v1249, 0.0
          %v1266 = vmax.f32 %v1250, 0.0
          %v1267 = vmax.f32 %v1251, 0.0
          %v1268 = vmax.f32 %v1252, 0.0
          %v1269 = vmax.f32 %v1253, 0.0
          %v1270 = vmax.f32 %v1254, 0.0
          %v1271 = vmax.f32 %v1255, 0.0
          %1272 = vst [vmem:[#allocation15] sm:$0xff] %v1256
          %1273 = vst [vmem:[#allocation15 + $0x8] sm:$0xff] %v1257
          %1274 = vst [vmem:[#allocation15 + $0x10] sm:$0xff] %v1258
          %1275 = vst [vmem:[#allocation15 + $0x18] sm:$0xff] %v1259
          %1276 = vst [vmem:[#allocation15 + $0x20] sm:$0xff] %v1260
          %1277 = vst [vmem:[#allocation15 + $0x28] sm:$0xff] %v1261
          %1278 = vst [vmem:[#allocation15 + $0x30] sm:$0xff] %v1262
          %1279 = vst [vmem:[#allocation15 + $0x38] sm:$0xff] %v1263
          %1280 = vst [vmem:[#allocation15 + $0x40] sm:$0xff] %v1264
          %1281 = vst [vmem:[#allocation15 + $0x48] sm:$0xff] %v1265
          %1282 = vst [vmem:[#allocation15 + $0x50] sm:$0xff] %v1266
          %1283 = vst [vmem:[#allocation15 + $0x58] sm:$0xff] %v1267
          %1284 = vst [vmem:[#allocation15 + $0x60] sm:$0xff] %v1268
          %1285 = vst [vmem:[#allocation15 + $0x68] sm:$0xff] %v1269
          %1286 = vst [vmem:[#allocation15 + $0x70] sm:$0xff] %v1270
          %1287 = vst [vmem:[#allocation15 + $0x78] sm:$0xff] %v1271
        $region76: #{tpu_custom_call.1} parent=43 // pred_fallthru
          _
        // Predicated region
        $region77: #{tpu_custom_call.1} parent=43 // pred_check
          %p1288 = pneg %p214
        $region78: #{tpu_custom_call.1} parent=43 // pred_check_branch
          %1290 = sbr.rel (%p1288) target = $region80
        $region79: #{tpu_custom_call.1} parent=43 // pred_region
          %s1291 = smul.u32 16, %s38
          %1293 = vsyncadd [#allocation8], 0
          %s1294 = smul.addr %s1291, 8
          %s1295 = scalar_lea.hbm %s8, %s1294
          %s1296 = sshll.u32 [#allocation15], 4
          %s1297 = int_to_ptr.vmem [resolvable:$true] %s1296
          %s1298 = sshll.u32 %s1295, 4
          %s1299 = int_to_ptr.hbm [resolvable:$true] %s1298
          %1304 = dma.vmem_to_hbm [thread:$0]  %s1297, 2048, %s1299, [#allocation8], 128, 128, 8
        $region80: #{tpu_custom_call.1} parent=43 // pred_fallthru
          _
        // Predicated region
        $region81: #{tpu_custom_call.1} parent=43 // pred_check
          %p1305 = pneg %p214
        $region82: #{tpu_custom_call.1} parent=43 // pred_check_branch
          %1307 = sbr.rel (%p1305) target = $region84
        $region83: #{tpu_custom_call.1} parent=43 // pred_region
          %1309 = dma.done [#allocation8], 2048
        $region84: #{tpu_custom_call.1} parent=43 // pred_fallthru
          _
      $region44: #{tpu_custom_call.1} parent=5 // pred_fallthru
        _
      %p1310 = scmp.le.s32.totalorder 2, %s29
      // Predicated region
      $region85: #{tpu_custom_call.1} parent=5 // pred_check
        %p1311 = pneg %p1310
      $region86: #{tpu_custom_call.1} parent=5 // pred_check_branch
        %1313 = sbr.rel (%p1311) target = $region88
      $region87: #{tpu_custom_call.1} parent=5 // pred_region
        %s1314 = ssub.s32 %s29, 2
      $region88: #{tpu_custom_call.1} parent=5 // pred_fallthru
        _
    $region6: #{tpu_custom_call.1} parent=1 // loop_footer
      %s33 = sadd.s32 1, %s29
    $region7: #{tpu_custom_call.1} parent=1 // loop_footer_branch
      %28 = sbr.rel target = $region3
    $region8: #{tpu_custom_call.1} parent=1 // loop_exit
      _
    %1315 = vsyncpa [#allocation7], 1
    %s1316 = scalar_lea.sflag [#allocation7], 1
    %1317 = vsyncpa %s1316, 1
    %1318 = vsyncpa [#allocation10], 1
    %1319 = vsyncpa [#allocation14], 1
    %1320 = vsyncpa [#allocation8], 1
    %s1321 = scalar_lea.sflag [#allocation8], 1
    %1322 = vsyncpa %s1321, 1

</llo_original>
